<compile_context>
chip_gen: v7x
topology: tpu7x:2x2x1
jax: 0.10.0
libtpu: 0.0.40
codegen_flags: <defaults>
</compile_context>

<pallas_src>
import numpy as np
import jax
import jax.numpy as jnp
from jax.experimental import pallas as pl
from jax.experimental.pallas import tpu as pltpu

SQRT_HALF = 0.7071067811865475


def _gelu(x, approximate=False):
    if approximate:
        # tanh approximation -> EUP (separate VLIW slot); slightly differs from torch default
        return jax.nn.gelu(x, approximate=True)
    # exact (erf-based) GELU == torch.nn.GELU() default
    return 0.5 * x * (1.0 + jax.lax.erf(x * SQRT_HALF))


# ----------------------------- fused Pallas kernel -----------------------------

def _make_trend_mixing_kernel(n_scales, mx_dtype, approximate_gelu):
    dsl = n_scales - 1

    def kernel(*refs):
        x_refs = refs[:n_scales]                        # each (Bb, C, T_j)
        w_refs = refs[n_scales:n_scales + 4 * dsl]      # (w1, b1, w2, b2) per up-sampling layer
        o_refs = refs[n_scales + 4 * dsl:]              # each (Bb, T_j, C)

        Bb, C, _ = x_refs[n_scales - 1].shape

        # shortest scale passes through unchanged -> just permute(0, 2, 1)
        x_low = x_refs[n_scales - 1][...]
        o_refs[n_scales - 1][...] = jnp.transpose(
            x_low, (0, 2, 1)).astype(o_refs[n_scales - 1].dtype)
        # fold the batch block into the MXU M dimension: (Bb, C, T) -> (Bb*C, T)
        out_low = x_low.reshape(Bb * C, x_low.shape[-1])

        # top-down mixing over scales n-2, n-3, ..., 0
        for i in range(dsl):
            j = n_scales - 2 - i
            w1 = w_refs[4 * i][...]
            b1 = w_refs[4 * i + 1][...]
            w2 = w_refs[4 * i + 2][...]
            b2 = w_refs[4 * i + 3][...]

            h = jnp.dot(out_low.astype(mx_dtype), w1,
                        preferred_element_type=jnp.float32) + b1
            h = _gelu(h, approximate_gelu)
            res = jnp.dot(h.astype(mx_dtype), w2,
                          preferred_element_type=jnp.float32) + b2

            # lazy-load this scale's residual input right before it is needed
            x_j = x_refs[j][...].reshape(Bb * C, res.shape[-1])
            out = x_j + res                               # residual (kept in f32)
            o_refs[j][...] = jnp.transpose(
                out.reshape(Bb, C, out.shape[-1]), (0, 2, 1)).astype(o_refs[j].dtype)
            out_low = out

    return kernel


def _pick_batch_block(B, per_b_bytes, budget_bytes):
    """Largest divisor Bb of B s.t. double-buffered slabs fit and grid has >= 2 steps."""
    best = 1
    for d in range(1, B + 1):
        if B % d != 0:
            continue
        if B >= 2 and d > B // 2:        # keep >= 2 grid steps (v7x has 2 TensorCores)
            continue
        if 2 * d * per_b_bytes <= budget_bytes:
            best = max(best, d)
    return best


def multi_scale_trend_mixing_pallas(trend_list, layers, *,
                                    mx_dtype=jnp.bfloat16,
                                    out_dtype=jnp.float32,
                                    approximate_gelu=False,
                                    batch_block=None):
    """trend_list[j]: [B, d_model, T_j]  ->  list of [B, T_j, d_model]."""
    n = len(trend_list)
    dsl = n - 1
    B, C, _ = trend_list[0].shape
    Ts = [x.shape[2] for x in trend_list]

    mx_isz = jnp.dtype(mx_dtype).itemsize
    out_isz = jnp.dtype(out_dtype).itemsize
    layer_dims = [(Ts[dsl - i], Ts[dsl - i - 1]) for i in range(dsl)]
    weight_bytes = sum(t_in * t_out * mx_isz + t_out * 4 +
                       t_out * t_out * mx_isz + t_out * 4
                       for t_in, t_out in layer_dims)

    # ---- per-generation batch-block size (v7x: 64 MiB VMEM; v5e default scoped limit 16 MiB)
    try:
        vmem_cap = pltpu.get_tpu_info().vmem_capacity_bytes
    except Exception:
        vmem_cap = 64 << 20          # conservative (v7x) fallback
    per_b_bytes = sum(C * T * 4 for T in Ts) + sum(C * T * out_isz for T in Ts)
    budget = max(int(0.4 * vmem_cap) - weight_bytes, per_b_bytes * 2)
    Bb = batch_block if batch_block is not None else _pick_batch_block(B, per_b_bytes, budget)
    assert B % Bb == 0, (B, Bb)

    in_specs = []
    for T in Ts:
        in_specs.append(pl.BlockSpec((Bb, C, T), lambda b: (b, 0, 0)))

    weight_args = []
    for (w1, b1, w2, b2) in layers:
        weight_args += [w1.astype(mx_dtype), b1, w2.astype(mx_dtype), b2]
        for a in (w1, b1, w2, b2):
            # constant index_map -> fetched once, stays resident across grid steps;
            # single buffer: no double-buffering needed for grid-invariant data.
            in_specs.append(pl.BlockSpec(tuple(a.shape), lambda b: (0, 0),
                                         pipeline_mode=pl.Buffered(1)))

    out_specs = tuple(pl.BlockSpec((Bb, T, C), lambda b: (b, 0, 0)) for T in Ts)
    out_shape = tuple(jax.ShapeDtypeStruct((B, T, C), out_dtype) for T in Ts)

    flops = 2 * B * C * sum(t_in * t_out + t_out * t_out for t_in, t_out in layer_dims)
    transcendentals = B * C * sum(t_out for _, t_out in layer_dims)
    bytes_accessed = (sum(B * C * T * 4 for T in Ts)
                      + sum(B * T * C * out_isz for T in Ts)
                      + weight_bytes)

    vmem_needed = 2 * Bb * per_b_bytes + 2 * weight_bytes
    vmem_limit = int(min(max(2 * vmem_needed, 32 << 20), 64 << 20))

    outs = pl.pallas_call(
        _make_trend_mixing_kernel(n, mx_dtype, approximate_gelu),
        grid=(B // Bb,),
        in_specs=in_specs,
        out_specs=out_specs,
        out_shape=out_shape,
        compiler_params=pltpu.CompilerParams(
            dimension_semantics=("parallel",),
            vmem_limit_bytes=vmem_limit),
        cost_estimate=pl.CostEstimate(flops=flops,
                                      transcendentals=transcendentals,
                                      bytes_accessed=bytes_accessed),
    )(*trend_list, *weight_args)
    return list(outs)


# --------------------------- pure-JAX reference ---------------------------

def multi_scale_trend_mixing_ref(trend_list, layers):
    rev = list(trend_list)[::-1]
    out_low = rev[0]
    out_high = rev[1]
    out_list = [jnp.transpose(out_low, (0, 2, 1))]
    for i in range(len(rev) - 1):
        w1, b1, w2, b2 = layers[i]
        h = _gelu(jnp.dot(out_low, w1) + b1)
        res = jnp.dot(h, w2) + b2
        out_high = out_high + res
        out_low = out_high
        if i + 2 <= len(rev) - 1:
            out_high = rev[i + 2]
        out_list.append(jnp.transpose(out_low, (0, 2, 1)))
    out_list.reverse()
    return out_list


# ----------------------------- params / setup -----------------------------

def init_layers(key, Ts):
    """up_sampling_layers[i]: Linear(T_{dsl-i} -> T_{dsl-i-1}), GELU, Linear(T_{dsl-i-1})."""
    dsl = len(Ts) - 1
    keys = iter(jax.random.split(key, 4 * dsl))

    def linear(kin, kout):
        bound = 1.0 / np.sqrt(kin)
        W = jax.random.uniform(next(keys), (kin, kout), jnp.float32, -bound, bound)
        b = jax.random.uniform(next(keys), (1, kout), jnp.float32, -bound, bound)
        return W, b

    layers = []
    for i in range(dsl):
        t_in, t_out = Ts[dsl - i], Ts[dsl - i - 1]
        w1, b1 = linear(t_in, t_out)
        w2, b2 = linear(t_out, t_out)
        layers.append((w1, b1, w2, b2))
    return layers


if __name__ == "__main__":
    seq_len = 32
    down_sampling_window = 2
    down_sampling_layers = 2
    d_model = 16
    B = 8
    Ts = [seq_len // down_sampling_window ** i
          for i in range(down_sampling_layers + 1)]          # [32, 16, 8]

    key = jax.random.PRNGKey(0)
    kx, kp = jax.random.split(key)
    xkeys = jax.random.split(kx, len(Ts))
    # trend_list as the upstream series_decomp produces it: [B, d_model, T_j]
    trend_list = [jax.random.normal(k, (B, d_model, T), jnp.float32)
                  for k, T in zip(xkeys, Ts)]

    layers = init_layers(kp, Ts)

    out_ref = multi_scale_trend_mixing_ref(trend_list, layers)
    out_ref = jax.block_until_ready(out_ref)

    # exact f32 path (module semantics, tight tolerance)
    out_f32 = multi_scale_trend_mixing_pallas(trend_list, layers, mx_dtype=jnp.float32)
    out_f32 = jax.block_until_ready(out_f32)
    for a, b in zip(out_f32, out_ref):
        np.testing.assert_allclose(np.asarray(a), np.asarray(b), rtol=5e-3, atol=5e-3)

    # default path: bf16 MXU operands, f32 accumulation / residual carry
    out_bf16 = multi_scale_trend_mixing_pallas(trend_list, layers)
    out_bf16 = jax.block_until_ready(out_bf16)
    for a, b in zip(out_bf16, out_ref):
        np.testing.assert_allclose(np.asarray(a), np.asarray(b), rtol=3e-2, atol=3e-2)

    print("KERNEL_OK")
</pallas_src>

<mosaic_0001>
module attributes {stable_mosaic.version = 11 : i64} {
  func.func @kernel(%arg0: i32, %arg1: memref<4x16x32xf32, #tpu.memory_space<vmem>>, %arg2: memref<4x16x16xf32, #tpu.memory_space<vmem>>, %arg3: memref<4x16x8xf32, #tpu.memory_space<vmem>>, %arg4: memref<8x16xf32, #tpu.memory_space<vmem>>, %arg5: memref<1x16xf32, #tpu.memory_space<vmem>>, %arg6: memref<16x16xf32, #tpu.memory_space<vmem>>, %arg7: memref<1x16xf32, #tpu.memory_space<vmem>>, %arg8: memref<16x32xf32, #tpu.memory_space<vmem>>, %arg9: memref<1x32xf32, #tpu.memory_space<vmem>>, %arg10: memref<32x32xf32, #tpu.memory_space<vmem>>, %arg11: memref<1x32xf32, #tpu.memory_space<vmem>>, %arg12: memref<4x32x16xf32, #tpu.memory_space<vmem>>, %arg13: memref<4x16x16xf32, #tpu.memory_space<vmem>>, %arg14: memref<4x8x16xf32, #tpu.memory_space<vmem>>) attributes {dimension_semantics = [#tpu.dimension_semantics<parallel>], iteration_bounds = array<i64: 2>, scalar_prefetch = 0 : i64, scratch_operands = 0 : i64, tpu.core_type = #tpu.core_type<tc>, window_params = [{transform_indices = @transform_0, window_bounds = array<i64: 4, 16, 32>}, {transform_indices = @transform_1, window_bounds = array<i64: 4, 16, 16>}, {transform_indices = @transform_2, window_bounds = array<i64: 4, 16, 8>}, {pipeline_mode = #tpu.pipeline_mode<synchronous>, transform_indices = @transform_3, window_bounds = array<i64: 8, 16>}, {pipeline_mode = #tpu.pipeline_mode<synchronous>, transform_indices = @transform_4, window_bounds = array<i64: 1, 16>}, {pipeline_mode = #tpu.pipeline_mode<synchronous>, transform_indices = @transform_5, window_bounds = array<i64: 16, 16>}, {pipeline_mode = #tpu.pipeline_mode<synchronous>, transform_indices = @transform_6, window_bounds = array<i64: 1, 16>}, {pipeline_mode = #tpu.pipeline_mode<synchronous>, transform_indices = @transform_7, window_bounds = array<i64: 16, 32>}, {pipeline_mode = #tpu.pipeline_mode<synchronous>, transform_indices = @transform_8, window_bounds = array<i64: 1, 32>}, {pipeline_mode = #tpu.pipeline_mode<synchronous>, transform_indices = @transform_9, window_bounds = array<i64: 32, 32>}, {pipeline_mode = #tpu.pipeline_mode<synchronous>, transform_indices = @transform_10, window_bounds = array<i64: 1, 32>}, {transform_indices = @transform_11, window_bounds = array<i64: 4, 32, 16>}, {transform_indices = @transform_12, window_bounds = array<i64: 4, 16, 16>}, {transform_indices = @transform_13, window_bounds = array<i64: 4, 8, 16>}]} {
    %c0 = arith.constant 0 : index
    %c0_0 = arith.constant 0 : index
    %c0_1 = arith.constant 0 : index
    %0 = vector.load %arg3[%c0, %c0_0, %c0_1] : memref<4x16x8xf32, #tpu.memory_space<vmem>>, vector<4x16x8xf32>
    %1 = tpu.transpose %0, [0, 2, 1] : vector<4x16x8xf32> -> vector<4x8x16xf32>
    %c0_2 = arith.constant 0 : index
    %c0_3 = arith.constant 0 : index
    %c0_4 = arith.constant 0 : index
    %2 = vector.load %arg14[%c0_2, %c0_3, %c0_4] : memref<4x8x16xf32, #tpu.memory_space<vmem>>, vector<4x8x16xf32>
    tpu.vector_store %arg14[%c0_2, %c0_3, %c0_4], %1 {strides = array<i32>} : memref<4x8x16xf32, #tpu.memory_space<vmem>>, vector<4x8x16xf32>,
    %3 = vector.shape_cast %0 : vector<4x16x8xf32> to vector<64x8xf32>
    %c0_5 = arith.constant 0 : index
    %c0_6 = arith.constant 0 : index
    %4 = vector.load %arg4[%c0_5, %c0_6] : memref<8x16xf32, #tpu.memory_space<vmem>>, vector<8x16xf32>
    %c0_7 = arith.constant 0 : index
    %c0_8 = arith.constant 0 : index
    %5 = vector.load %arg5[%c0_7, %c0_8] : memref<1x16xf32, #tpu.memory_space<vmem>>, vector<1x16xf32>
    %c0_9 = arith.constant 0 : index
    %c0_10 = arith.constant 0 : index
    %6 = vector.load %arg6[%c0_9, %c0_10] : memref<16x16xf32, #tpu.memory_space<vmem>>, vector<16x16xf32>
    %c0_11 = arith.constant 0 : index
    %c0_12 = arith.constant 0 : index
    %7 = vector.load %arg7[%c0_11, %c0_12] : memref<1x16xf32, #tpu.memory_space<vmem>>, vector<1x16xf32>
    %cst = arith.constant dense<0.000000e+00> : vector<64x16xf32>
    %8 = tpu.matmul %3, %4, %cst {dimension_numbers = #tpu.dot_dimension_numbers<[1], [0], [0], [1], [0, 0, 1, 1], [], []>} : vector<64x8xf32>, vector<8x16xf32>, vector<64x16xf32> -> vector<64x16xf32>
    %9 = vector.broadcast %5 : vector<1x16xf32> to vector<64x16xf32>
    %10 = arith.addf %8, %9 : vector<64x16xf32>
    %cst_13 = arith.constant 5.000000e-01 : f32
    %11 = vector.broadcast %cst_13 : f32 to vector<64x16xf32>
    %12 = arith.mulf %11, %10 : vector<64x16xf32>
    %cst_14 = arith.constant 0.707106769 : f32
    %13 = vector.broadcast %cst_14 : f32 to vector<64x16xf32>
    %14 = arith.mulf %10, %13 : vector<64x16xf32>
    %15 = math.erf %14 : vector<64x16xf32>
    %cst_15 = arith.constant 1.000000e+00 : f32
    %16 = vector.broadcast %cst_15 : f32 to vector<64x16xf32>
    %17 = arith.addf %16, %15 : vector<64x16xf32>
    %18 = arith.mulf %12, %17 : vector<64x16xf32>
    %cst_16 = arith.constant dense<0.000000e+00> : vector<64x16xf32>
    %19 = tpu.matmul %18, %6, %cst_16 {dimension_numbers = #tpu.dot_dimension_numbers<[1], [0], [0], [1], [0, 0, 1, 1], [], []>} : vector<64x16xf32>, vector<16x16xf32>, vector<64x16xf32> -> vector<64x16xf32>
    %20 = vector.broadcast %7 : vector<1x16xf32> to vector<64x16xf32>
    %21 = arith.addf %19, %20 : vector<64x16xf32>
    %c0_17 = arith.constant 0 : index
    %c0_18 = arith.constant 0 : index
    %c0_19 = arith.constant 0 : index
    %22 = vector.load %arg2[%c0_17, %c0_18, %c0_19] : memref<4x16x16xf32, #tpu.memory_space<vmem>>, vector<4x16x16xf32>
    %23 = vector.shape_cast %22 : vector<4x16x16xf32> to vector<64x16xf32>
    %24 = arith.addf %23, %21 : vector<64x16xf32>
    %25 = vector.shape_cast %24 : vector<64x16xf32> to vector<4x16x16xf32>
    %26 = tpu.transpose %25, [0, 2, 1] : vector<4x16x16xf32> -> vector<4x16x16xf32>
    %c0_20 = arith.constant 0 : index
    %c0_21 = arith.constant 0 : index
    %c0_22 = arith.constant 0 : index
    %27 = vector.load %arg13[%c0_20, %c0_21, %c0_22] : memref<4x16x16xf32, #tpu.memory_space<vmem>>, vector<4x16x16xf32>
    tpu.vector_store %arg13[%c0_20, %c0_21, %c0_22], %26 {strides = array<i32>} : memref<4x16x16xf32, #tpu.memory_space<vmem>>, vector<4x16x16xf32>,
    %c0_23 = arith.constant 0 : index
    %c0_24 = arith.constant 0 : index
    %28 = vector.load %arg8[%c0_23, %c0_24] : memref<16x32xf32, #tpu.memory_space<vmem>>, vector<16x32xf32>
    %c0_25 = arith.constant 0 : index
    %c0_26 = arith.constant 0 : index
    %29 = vector.load %arg9[%c0_25, %c0_26] : memref<1x32xf32, #tpu.memory_space<vmem>>, vector<1x32xf32>
    %c0_27 = arith.constant 0 : index
    %c0_28 = arith.constant 0 : index
    %30 = vector.load %arg10[%c0_27, %c0_28] : memref<32x32xf32, #tpu.memory_space<vmem>>, vector<32x32xf32>
    %c0_29 = arith.constant 0 : index
    %c0_30 = arith.constant 0 : index
    %31 = vector.load %arg11[%c0_29, %c0_30] : memref<1x32xf32, #tpu.memory_space<vmem>>, vector<1x32xf32>
    %cst_31 = arith.constant dense<0.000000e+00> : vector<64x32xf32>
    %32 = tpu.matmul %24, %28, %cst_31 {dimension_numbers = #tpu.dot_dimension_numbers<[1], [0], [0], [1], [0, 0, 1, 1], [], []>} : vector<64x16xf32>, vector<16x32xf32>, vector<64x32xf32> -> vector<64x32xf32>
    %33 = vector.broadcast %29 : vector<1x32xf32> to vector<64x32xf32>
    %34 = arith.addf %32, %33 : vector<64x32xf32>
    %cst_32 = arith.constant 5.000000e-01 : f32
    %35 = vector.broadcast %cst_32 : f32 to vector<64x32xf32>
    %36 = arith.mulf %35, %34 : vector<64x32xf32>
    %cst_33 = arith.constant 0.707106769 : f32
    %37 = vector.broadcast %cst_33 : f32 to vector<64x32xf32>
    %38 = arith.mulf %34, %37 : vector<64x32xf32>
    %39 = math.erf %38 : vector<64x32xf32>
    %cst_34 = arith.constant 1.000000e+00 : f32
    %40 = vector.broadcast %cst_34 : f32 to vector<64x32xf32>
    %41 = arith.addf %40, %39 : vector<64x32xf32>
    %42 = arith.mulf %36, %41 : vector<64x32xf32>
    %cst_35 = arith.constant dense<0.000000e+00> : vector<64x32xf32>
    %43 = tpu.matmul %42, %30, %cst_35 {dimension_numbers = #tpu.dot_dimension_numbers<[1], [0], [0], [1], [0, 0, 1, 1], [], []>} : vector<64x32xf32>, vector<32x32xf32>, vector<64x32xf32> -> vector<64x32xf32>
    %44 = vector.broadcast %31 : vector<1x32xf32> to vector<64x32xf32>
    %45 = arith.addf %43, %44 : vector<64x32xf32>
    %c0_36 = arith.constant 0 : index
    %c0_37 = arith.constant 0 : index
    %c0_38 = arith.constant 0 : index
    %46 = vector.load %arg1[%c0_36, %c0_37, %c0_38] : memref<4x16x32xf32, #tpu.memory_space<vmem>>, vector<4x16x32xf32>
    %47 = vector.shape_cast %46 : vector<4x16x32xf32> to vector<64x32xf32>
    %48 = arith.addf %47, %45 : vector<64x32xf32>
    %49 = vector.shape_cast %48 : vector<64x32xf32> to vector<4x16x32xf32>
    %50 = tpu.transpose %49, [0, 2, 1] : vector<4x16x32xf32> -> vector<4x32x16xf32>
    %c0_39 = arith.constant 0 : index
    %c0_40 = arith.constant 0 : index
    %c0_41 = arith.constant 0 : index
    %51 = vector.load %arg12[%c0_39, %c0_40, %c0_41] : memref<4x32x16xf32, #tpu.memory_space<vmem>>, vector<4x32x16xf32>
    tpu.vector_store %arg12[%c0_39, %c0_40, %c0_41], %50 {strides = array<i32>} : memref<4x32x16xf32, #tpu.memory_space<vmem>>, vector<4x32x16xf32>,
    return
  }
  func.func @transform_0(%arg0: i32) -> (i32, i32, i32) {
    %c0_i32 = arith.constant 0 : i32
    %c0_i32_0 = arith.constant 0 : i32
    %c0_i32_1 = arith.constant 0 : i32
    return %arg0, %c0_i32, %c0_i32_0 : i32, i32, i32
  }
  func.func @transform_1(%arg0: i32) -> (i32, i32, i32) {
    %c0_i32 = arith.constant 0 : i32
    %c0_i32_0 = arith.constant 0 : i32
    %c0_i32_1 = arith.constant 0 : i32
    return %arg0, %c0_i32, %c0_i32_0 : i32, i32, i32
  }
  func.func @transform_2(%arg0: i32) -> (i32, i32, i32) {
    %c0_i32 = arith.constant 0 : i32
    %c0_i32_0 = arith.constant 0 : i32
    %c0_i32_1 = arith.constant 0 : i32
    return %arg0, %c0_i32, %c0_i32_0 : i32, i32, i32
  }
  func.func @transform_3(%arg0: i32) -> (i32, i32) {
    %c0_i32 = arith.constant 0 : i32
    %c0_i32_0 = arith.constant 0 : i32
    %c0_i32_1 = arith.constant 0 : i32
    return %c0_i32, %c0_i32_0 : i32, i32
  }
  func.func @transform_4(%arg0: i32) -> (i32, i32) {
    %c0_i32 = arith.constant 0 : i32
    %c0_i32_0 = arith.constant 0 : i32
    %c0_i32_1 = arith.constant 0 : i32
    return %c0_i32, %c0_i32_0 : i32, i32
  }
  func.func @transform_5(%arg0: i32) -> (i32, i32) {
    %c0_i32 = arith.constant 0 : i32
    %c0_i32_0 = arith.constant 0 : i32
    %c0_i32_1 = arith.constant 0 : i32
    return %c0_i32, %c0_i32_0 : i32, i32
  }
  func.func @transform_6(%arg0: i32) -> (i32, i32) {
    %c0_i32 = arith.constant 0 : i32
    %c0_i32_0 = arith.constant 0 : i32
    %c0_i32_1 = arith.constant 0 : i32
    return %c0_i32, %c0_i32_0 : i32, i32
  }
  func.func @transform_7(%arg0: i32) -> (i32, i32) {
    %c0_i32 = arith.constant 0 : i32
    %c0_i32_0 = arith.constant 0 : i32
    %c0_i32_1 = arith.constant 0 : i32
    return %c0_i32, %c0_i32_0 : i32, i32
  }
  func.func @transform_8(%arg0: i32) -> (i32, i32) {
    %c0_i32 = arith.constant 0 : i32
    %c0_i32_0 = arith.constant 0 : i32
    %c0_i32_1 = arith.constant 0 : i32
    return %c0_i32, %c0_i32_0 : i32, i32
  }
  func.func @transform_9(%arg0: i32) -> (i32, i32) {
    %c0_i32 = arith.constant 0 : i32
    %c0_i32_0 = arith.constant 0 : i32
    %c0_i32_1 = arith.constant 0 : i32
    return %c0_i32, %c0_i32_0 : i32, i32
  }
  func.func @transform_10(%arg0: i32) -> (i32, i32) {
    %c0_i32 = arith.constant 0 : i32
    %c0_i32_0 = arith.constant 0 : i32
    %c0_i32_1 = arith.constant 0 : i32
    return %c0_i32, %c0_i32_0 : i32, i32
  }
  func.func @transform_11(%arg0: i32) -> (i32, i32, i32) {
    %c0_i32 = arith.constant 0 : i32
    %c0_i32_0 = arith.constant 0 : i32
    %c0_i32_1 = arith.constant 0 : i32
    return %arg0, %c0_i32, %c0_i32_0 : i32, i32, i32
  }
  func.func @transform_12(%arg0: i32) -> (i32, i32, i32) {
    %c0_i32 = arith.constant 0 : i32
    %c0_i32_0 = arith.constant 0 : i32
    %c0_i32_1 = arith.constant 0 : i32
    return %arg0, %c0_i32, %c0_i32_0 : i32, i32, i32
  }
  func.func @transform_13(%arg0: i32) -> (i32, i32, i32) {
    %c0_i32 = arith.constant 0 : i32
    %c0_i32_0 = arith.constant 0 : i32
    %c0_i32_1 = arith.constant 0 : i32
    return %arg0, %c0_i32, %c0_i32_0 : i32, i32, i32
  }
}

</mosaic_0001>

<llo_original>
// kernel: tpu_custom_call.1
$region0: #{tpu_custom_call.1}
  #allocation0 [shape = 'u32[]', space=smem, size = 0x4, offset = 0x4, fixed_abs, tag = 'smem constant byte address 0x4 - core index']
  #allocation1 [shape = 'u32[144,128]{1,0:T(1,128)}', space=vmem, size = 0x12000, scoped, tag = 'internal scratch']
  %s0 = inlined_call_operand.vmem [shape: f32[8,16,32], index: 0, kind: input, shape index: {}]
  %s1 = inlined_call_operand.hbm [shape: f32[8,16,16], index: 1, kind: input, shape index: {}]
  %s2 = inlined_call_operand.vmem [shape: f32[8,16,8], index: 2, kind: input, shape index: {}]
  %s3 = inlined_call_operand.vmem [shape: f32[8,16], index: 3, kind: input, shape index: {}]
  %s4 = inlined_call_operand.vmem [shape: f32[1,16], index: 4, kind: input, shape index: {}]
  %s5 = inlined_call_operand.vmem [shape: f32[16,16], index: 5, kind: input, shape index: {}]
  %s6 = inlined_call_operand.vmem [shape: f32[1,16], index: 6, kind: input, shape index: {}]
  %s7 = inlined_call_operand.vmem [shape: f32[16,32], index: 7, kind: input, shape index: {}]
  %s8 = inlined_call_operand.vmem [shape: f32[1,32], index: 8, kind: input, shape index: {}]
  %s9 = inlined_call_operand.vmem [shape: f32[32,32], index: 9, kind: input, shape index: {}]
  %s10 = inlined_call_operand.vmem [shape: f32[1,32], index: 10, kind: input, shape index: {}]
  %s11 = inlined_call_operand.vmem [shape: f32[8,32,16], index: 11, kind: output, shape index: {0}]
  %s12 = inlined_call_operand.hbm [shape: f32[8,16,16], index: 12, kind: output, shape index: {1}]
  %s13 = inlined_call_operand.hbm [shape: f32[8,8,16], index: 13, kind: output, shape index: {2}]
  %14 = xla_tuple %s11, %s12, %s13
  %s15 = sld [smem:[#allocation0]]
  $region97: #{tpu_custom_call.1} parent=0
    _
  %s17 = ssub.s32 1, %s15
  %s18 = scalar_select 0, %s17, %s15
  $region1: #{tpu_custom_call.1} parent=0
    #allocation2 [shape = 'u8[65536]{0}', space=vmem, size = 0x10000, scoped, tag = 'input window, operand 1']
    #allocation3 [shape = 's32[2]{0}', space=sflag, size = 0x8, scoped, tag = 'scoped memory for tpu_custom_call.1']
    #allocation4 [shape = 's32[2]{0}', space=sflag, size = 0x8, scoped, tag = 'scoped memory for tpu_custom_call.1']
    #allocation5 [shape = 'u8[65536]{0}', space=vmem, size = 0x10000, scoped, tag = 'output window, operand 1']
    #allocation6 [shape = 'u8[32768]{0}', space=vmem, size = 0x8000, scoped, tag = 'output window, operand 2']
    #allocation7 [shape = 's32[2]{0}', space=sflag, size = 0x8, scoped, tag = 'scoped memory for tpu_custom_call.1']
    %19 = vsyncpa [#allocation3], 0
    %s20 = scalar_lea.sflag [#allocation3], 1
    %21 = vsyncpa %s20, 0
    %22 = vsyncpa [#allocation4], 0
    %s23 = scalar_lea.sflag [#allocation4], 1
    %24 = vsyncpa %s23, 0
    %25 = vsyncpa [#allocation7], 0
    %s26 = scalar_lea.sflag [#allocation7], 1
    %27 = vsyncpa %s26, 0
    loop: start=0, step=1, limit=4
    $region2: #{tpu_custom_call.1} parent=1 // loop_pre_header
      _
    $region3: #{tpu_custom_call.1} parent=1 // loop_header
      %s29 = sphi 0, %s33
      %p30 = scmp.ge.s32.totalorder %s29, 4
      %s39 = sphi 0, %s41
      %s42 = sphi 0, %s39
      %s43 = sphi 0, %s42
      %s59 = sphi 0, %s43
      %s65 = sphi 0, %s67
      %s68 = sphi 0, %s65
      %s69 = sphi 0, %s68
      %s85 = sphi 0, %s69
      %s91 = sphi 0, %s93
      %s94 = sphi 0, %s91
      %s95 = sphi 0, %s94
      %s111 = sphi 0, %s95
      %s115 = sphi 0, %s115
      %s117 = sphi 0, %s115
      %s118 = sphi 0, %s117
      %s132 = sphi 0, %s118
      %s136 = sphi 0, %s136
      %s138 = sphi 0, %s136
      %s139 = sphi 0, %s138
      %s153 = sphi 0, %s139
      %s157 = sphi 0, %s157
      %s159 = sphi 0, %s157
      %s160 = sphi 0, %s159
      %s174 = sphi 0, %s160
      %s178 = sphi 0, %s178
      %s180 = sphi 0, %s178
      %s181 = sphi 0, %s180
      %s195 = sphi 0, %s181
      %s199 = sphi 0, %s199
      %s201 = sphi 0, %s199
      %s202 = sphi 0, %s201
      %s216 = sphi 0, %s202
      %s220 = sphi 0, %s220
      %s222 = sphi 0, %s220
      %s223 = sphi 0, %s222
      %s237 = sphi 0, %s223
      %s241 = sphi 0, %s241
      %s243 = sphi 0, %s241
      %s244 = sphi 0, %s243
      %s258 = sphi 0, %s244
      %s262 = sphi 0, %s262
      %s264 = sphi 0, %s262
      %s265 = sphi 0, %s264
      %s279 = sphi 0, %s265
      %s285 = sphi 0, %s287
      %s288 = sphi 0, %s285
      %s289 = sphi 0, %s288
      %s305 = sphi 0, %s289
      %s311 = sphi 0, %s313
      %s314 = sphi 0, %s311
      %s315 = sphi 0, %s314
      %s331 = sphi 0, %s315
      %s337 = sphi 0, %s339
      %s340 = sphi 0, %s337
      %s341 = sphi 0, %s340
      %s357 = sphi 0, %s341
    $region4: #{tpu_custom_call.1} parent=1 // loop_header_branch
      %32 = sbr.rel (%p30) target = $region8
    $region5: #{tpu_custom_call.1} parent=1 // loop_body
      %s34 = ssub.s32 %s29, 1
      %s35 = ssub.s32 %s29, 2
      %s36 = sadd.s32 %s29, 1
      %s37 = ssub.s32 %s29, %s36
      %p38 = scmp.eq.s32.totalorder %s37, 0
      %s40 = sadd.s32 %s39, 1
      %s41 = scalar_select %p38, %s39, %s40
      %p44 = pneg %p38
      %p45 = scmp.eq.s32.totalorder %s29, 1
      %p46 = por %p44, %p45
      %p47 = scmp.ne.s32.totalorder %s39, %s42
      %p48 = scmp.eq.s32.totalorder %s29, 0
      %p49 = por %p47, %p48
      %p50 = scmp.ne.s32.totalorder %s39, %s42
      %p51 = scmp.eq.s32.totalorder %s34, 1
      %p52 = por %p50, %p51
      %p53 = scmp.ne.s32.totalorder %s42, %s43
      %p54 = scmp.eq.s32.totalorder %s34, 0
      %p55 = por %p53, %p54
      %p56 = scmp.ne.s32.totalorder %s42, %s43
      %p57 = scmp.eq.s32.totalorder %s35, 1
      %p58 = por %p56, %p57
      %p60 = scmp.ne.s32.totalorder %s43, %s59
      %p61 = scmp.eq.s32.totalorder %s35, 0
      %p62 = por %p60, %p61
      %s63 = ssub.s32 %s29, %s36
      %p64 = scmp.eq.s32.totalorder %s63, 0
      %s66 = sadd.s32 %s65, 1
      %s67 = scalar_select %p64, %s65, %s66
      %p70 = pneg %p64
      %p71 = scmp.eq.s32.totalorder %s29, 1
      %p72 = por %p70, %p71
      %p73 = scmp.ne.s32.totalorder %s65, %s68
      %p74 = scmp.eq.s32.totalorder %s29, 0
      %p75 = por %p73, %p74
      %p76 = scmp.ne.s32.totalorder %s65, %s68
      %p77 = scmp.eq.s32.totalorder %s34, 1
      %p78 = por %p76, %p77
      %p79 = scmp.ne.s32.totalorder %s68, %s69
      %p80 = scmp.eq.s32.totalorder %s34, 0
      %p81 = por %p79, %p80
      %p82 = scmp.ne.s32.totalorder %s68, %s69
      %p83 = scmp.eq.s32.totalorder %s35, 1
      %p84 = por %p82, %p83
      %p86 = scmp.ne.s32.totalorder %s69, %s85
      %p87 = scmp.eq.s32.totalorder %s35, 0
      %p88 = por %p86, %p87
      %s89 = ssub.s32 %s29, %s36
      %p90 = scmp.eq.s32.totalorder %s89, 0
      %s92 = sadd.s32 %s91, 1
      %s93 = scalar_select %p90, %s91, %s92
      %p96 = pneg %p90
      %p97 = scmp.eq.s32.totalorder %s29, 1
      %p98 = por %p96, %p97
      %p99 = scmp.ne.s32.totalorder %s91, %s94
      %p100 = scmp.eq.s32.totalorder %s29, 0
      %p101 = por %p99, %p100
      %p102 = scmp.ne.s32.totalorder %s91, %s94
      %p103 = scmp.eq.s32.totalorder %s34, 1
      %p104 = por %p102, %p103
      %p105 = scmp.ne.s32.totalorder %s94, %s95
      %p106 = scmp.eq.s32.totalorder %s34, 0
      %p107 = por %p105, %p106
      %p108 = scmp.ne.s32.totalorder %s94, %s95
      %p109 = scmp.eq.s32.totalorder %s35, 1
      %p110 = por %p108, %p109
      %p112 = scmp.ne.s32.totalorder %s95, %s111
      %p113 = scmp.eq.s32.totalorder %s35, 0
      %p114 = por %p112, %p113
      %s116 = sadd.s32 %s115, 1
      %p119 = scmp.eq.s32.totalorder %s29, 1
      %p120 = scmp.ne.s32.totalorder %s115, %s117
      %p121 = scmp.eq.s32.totalorder %s29, 0
      %p122 = por %p120, %p121
      %p123 = scmp.ne.s32.totalorder %s115, %s117
      %p124 = scmp.eq.s32.totalorder %s34, 1
      %p125 = por %p123, %p124
      %p126 = scmp.ne.s32.totalorder %s117, %s118
      %p127 = scmp.eq.s32.totalorder %s34, 0
      %p128 = por %p126, %p127
      %p129 = scmp.ne.s32.totalorder %s117, %s118
      %p130 = scmp.eq.s32.totalorder %s35, 1
      %p131 = por %p129, %p130
      %p133 = scmp.ne.s32.totalorder %s118, %s132
      %p134 = scmp.eq.s32.totalorder %s35, 0
      %p135 = por %p133, %p134
      %s137 = sadd.s32 %s136, 1
      %p140 = scmp.eq.s32.totalorder %s29, 1
      %p141 = scmp.ne.s32.totalorder %s136, %s138
      %p142 = scmp.eq.s32.totalorder %s29, 0
      %p143 = por %p141, %p142
      %p144 = scmp.ne.s32.totalorder %s136, %s138
      %p145 = scmp.eq.s32.totalorder %s34, 1
      %p146 = por %p144, %p145
      %p147 = scmp.ne.s32.totalorder %s138, %s139
      %p148 = scmp.eq.s32.totalorder %s34, 0
      %p149 = por %p147, %p148
      %p150 = scmp.ne.s32.totalorder %s138, %s139
      %p151 = scmp.eq.s32.totalorder %s35, 1
      %p152 = por %p150, %p151
      %p154 = scmp.ne.s32.totalorder %s139, %s153
      %p155 = scmp.eq.s32.totalorder %s35, 0
      %p156 = por %p154, %p155
      %s158 = sadd.s32 %s157, 1
      %p161 = scmp.eq.s32.totalorder %s29, 1
      %p162 = scmp.ne.s32.totalorder %s157, %s159
      %p163 = scmp.eq.s32.totalorder %s29, 0
      %p164 = por %p162, %p163
      %p165 = scmp.ne.s32.totalorder %s157, %s159
      %p166 = scmp.eq.s32.totalorder %s34, 1
      %p167 = por %p165, %p166
      %p168 = scmp.ne.s32.totalorder %s159, %s160
      %p169 = scmp.eq.s32.totalorder %s34, 0
      %p170 = por %p168, %p169
      %p171 = scmp.ne.s32.totalorder %s159, %s160
      %p172 = scmp.eq.s32.totalorder %s35, 1
      %p173 = por %p171, %p172
      %p175 = scmp.ne.s32.totalorder %s160, %s174
      %p176 = scmp.eq.s32.totalorder %s35, 0
      %p177 = por %p175, %p176
      %s179 = sadd.s32 %s178, 1
      %p182 = scmp.eq.s32.totalorder %s29, 1
      %p183 = scmp.ne.s32.totalorder %s178, %s180
      %p184 = scmp.eq.s32.totalorder %s29, 0
      %p185 = por %p183, %p184
      %p186 = scmp.ne.s32.totalorder %s178, %s180
      %p187 = scmp.eq.s32.totalorder %s34, 1
      %p188 = por %p186, %p187
      %p189 = scmp.ne.s32.totalorder %s180, %s181
      %p190 = scmp.eq.s32.totalorder %s34, 0
      %p191 = por %p189, %p190
      %p192 = scmp.ne.s32.totalorder %s180, %s181
      %p193 = scmp.eq.s32.totalorder %s35, 1
      %p194 = por %p192, %p193
      %p196 = scmp.ne.s32.totalorder %s181, %s195
      %p197 = scmp.eq.s32.totalorder %s35, 0
      %p198 = por %p196, %p197
      %s200 = sadd.s32 %s199, 1
      %p203 = scmp.eq.s32.totalorder %s29, 1
      %p204 = scmp.ne.s32.totalorder %s199, %s201
      %p205 = scmp.eq.s32.totalorder %s29, 0
      %p206 = por %p204, %p205
      %p207 = scmp.ne.s32.totalorder %s199, %s201
      %p208 = scmp.eq.s32.totalorder %s34, 1
      %p209 = por %p207, %p208
      %p210 = scmp.ne.s32.totalorder %s201, %s202
      %p211 = scmp.eq.s32.totalorder %s34, 0
      %p212 = por %p210, %p211
      %p213 = scmp.ne.s32.totalorder %s201, %s202
      %p214 = scmp.eq.s32.totalorder %s35, 1
      %p215 = por %p213, %p214
      %p217 = scmp.ne.s32.totalorder %s202, %s216
      %p218 = scmp.eq.s32.totalorder %s35, 0
      %p219 = por %p217, %p218
      %s221 = sadd.s32 %s220, 1
      %p224 = scmp.eq.s32.totalorder %s29, 1
      %p225 = scmp.ne.s32.totalorder %s220, %s222
      %p226 = scmp.eq.s32.totalorder %s29, 0
      %p227 = por %p225, %p226
      %p228 = scmp.ne.s32.totalorder %s220, %s222
      %p229 = scmp.eq.s32.totalorder %s34, 1
      %p230 = por %p228, %p229
      %p231 = scmp.ne.s32.totalorder %s222, %s223
      %p232 = scmp.eq.s32.totalorder %s34, 0
      %p233 = por %p231, %p232
      %p234 = scmp.ne.s32.totalorder %s222, %s223
      %p235 = scmp.eq.s32.totalorder %s35, 1
      %p236 = por %p234, %p235
      %p238 = scmp.ne.s32.totalorder %s223, %s237
      %p239 = scmp.eq.s32.totalorder %s35, 0
      %p240 = por %p238, %p239
      %s242 = sadd.s32 %s241, 1
      %p245 = scmp.eq.s32.totalorder %s29, 1
      %p246 = scmp.ne.s32.totalorder %s241, %s243
      %p247 = scmp.eq.s32.totalorder %s29, 0
      %p248 = por %p246, %p247
      %p249 = scmp.ne.s32.totalorder %s241, %s243
      %p250 = scmp.eq.s32.totalorder %s34, 1
      %p251 = por %p249, %p250
      %p252 = scmp.ne.s32.totalorder %s243, %s244
      %p253 = scmp.eq.s32.totalorder %s34, 0
      %p254 = por %p252, %p253
      %p255 = scmp.ne.s32.totalorder %s243, %s244
      %p256 = scmp.eq.s32.totalorder %s35, 1
      %p257 = por %p255, %p256
      %p259 = scmp.ne.s32.totalorder %s244, %s258
      %p260 = scmp.eq.s32.totalorder %s35, 0
      %p261 = por %p259, %p260
      %s263 = sadd.s32 %s262, 1
      %p266 = scmp.eq.s32.totalorder %s29, 1
      %p267 = scmp.ne.s32.totalorder %s262, %s264
      %p268 = scmp.eq.s32.totalorder %s29, 0
      %p269 = por %p267, %p268
      %p270 = scmp.ne.s32.totalorder %s262, %s264
      %p271 = scmp.eq.s32.totalorder %s34, 1
      %p272 = por %p270, %p271
      %p273 = scmp.ne.s32.totalorder %s264, %s265
      %p274 = scmp.eq.s32.totalorder %s34, 0
      %p275 = por %p273, %p274
      %p276 = scmp.ne.s32.totalorder %s264, %s265
      %p277 = scmp.eq.s32.totalorder %s35, 1
      %p278 = por %p276, %p277
      %p280 = scmp.ne.s32.totalorder %s265, %s279
      %p281 = scmp.eq.s32.totalorder %s35, 0
      %p282 = por %p280, %p281
      %s283 = ssub.s32 %s29, %s36
      %p284 = scmp.eq.s32.totalorder %s283, 0
      %s286 = sadd.s32 %s285, 1
      %s287 = scalar_select %p284, %s285, %s286
      %p290 = pneg %p284
      %p291 = scmp.eq.s32.totalorder %s29, 1
      %p292 = por %p290, %p291
      %p293 = scmp.ne.s32.totalorder %s285, %s288
      %p294 = scmp.eq.s32.totalorder %s29, 0
      %p295 = por %p293, %p294
      %p296 = scmp.ne.s32.totalorder %s285, %s288
      %p297 = scmp.eq.s32.totalorder %s34, 1
      %p298 = por %p296, %p297
      %p299 = scmp.ne.s32.totalorder %s288, %s289
      %p300 = scmp.eq.s32.totalorder %s34, 0
      %p301 = por %p299, %p300
      %p302 = scmp.ne.s32.totalorder %s288, %s289
      %p303 = scmp.eq.s32.totalorder %s35, 1
      %p304 = por %p302, %p303
      %p306 = scmp.ne.s32.totalorder %s289, %s305
      %p307 = scmp.eq.s32.totalorder %s35, 0
      %p308 = por %p306, %p307
      %s309 = ssub.s32 %s29, %s36
      %p310 = scmp.eq.s32.totalorder %s309, 0
      %s312 = sadd.s32 %s311, 1
      %s313 = scalar_select %p310, %s311, %s312
      %p316 = pneg %p310
      %p317 = scmp.eq.s32.totalorder %s29, 1
      %p318 = por %p316, %p317
      %p319 = scmp.ne.s32.totalorder %s311, %s314
      %p320 = scmp.eq.s32.totalorder %s29, 0
      %p321 = por %p319, %p320
      %p322 = scmp.ne.s32.totalorder %s311, %s314
      %p323 = scmp.eq.s32.totalorder %s34, 1
      %p324 = por %p322, %p323
      %p325 = scmp.ne.s32.totalorder %s314, %s315
      %p326 = scmp.eq.s32.totalorder %s34, 0
      %p327 = por %p325, %p326
      %p328 = scmp.ne.s32.totalorder %s314, %s315
      %p329 = scmp.eq.s32.totalorder %s35, 1
      %p330 = por %p328, %p329
      %p332 = scmp.ne.s32.totalorder %s315, %s331
      %p333 = scmp.eq.s32.totalorder %s35, 0
      %p334 = por %p332, %p333
      %s335 = ssub.s32 %s29, %s36
      %p336 = scmp.eq.s32.totalorder %s335, 0
      %s338 = sadd.s32 %s337, 1
      %s339 = scalar_select %p336, %s337, %s338
      %p342 = pneg %p336
      %p343 = scmp.eq.s32.totalorder %s29, 1
      %p344 = por %p342, %p343
      %p345 = scmp.ne.s32.totalorder %s337, %s340
      %p346 = scmp.eq.s32.totalorder %s29, 0
      %p347 = por %p345, %p346
      %p348 = scmp.ne.s32.totalorder %s337, %s340
      %p349 = scmp.eq.s32.totalorder %s34, 1
      %p350 = por %p348, %p349
      %p351 = scmp.ne.s32.totalorder %s340, %s341
      %p352 = scmp.eq.s32.totalorder %s34, 0
      %p353 = por %p351, %p352
      %p354 = scmp.ne.s32.totalorder %s340, %s341
      %p355 = scmp.eq.s32.totalorder %s35, 1
      %p356 = por %p354, %p355
      %p358 = scmp.ne.s32.totalorder %s341, %s357
      %p359 = scmp.eq.s32.totalorder %s35, 0
      %p360 = por %p358, %p359
      %p361 = scmp.le.s32.totalorder 1, %s29
      %p362 = scmp.lt.s32.totalorder %s29, 3
      %p363 = pnand %p361, %p362
      %p364 = pneg %p363
      // Predicated region
      $region9: #{tpu_custom_call.1} parent=5 // pred_check
        _
      $region10: #{tpu_custom_call.1} parent=5 // pred_check_branch
        %366 = sbr.rel (%p363) target = $region12
      $region11: #{tpu_custom_call.1} parent=5 // pred_region
        %s367 = ssub.s32 %s29, 1
        // Predicated region
        $region13: #{tpu_custom_call.1} parent=11 // pred_check
          %p368 = pneg %p128
        $region14: #{tpu_custom_call.1} parent=11 // pred_check_branch
          %370 = sbr.rel (%p368) target = $region16
        $region15: #{tpu_custom_call.1} parent=11 // pred_region
          _
        $region16: #{tpu_custom_call.1} parent=11 // pred_fallthru
          _
        // Predicated region
        $region17: #{tpu_custom_call.1} parent=11 // pred_check
          %p371 = pneg %p149
        $region18: #{tpu_custom_call.1} parent=11 // pred_check_branch
          %373 = sbr.rel (%p371) target = $region20
        $region19: #{tpu_custom_call.1} parent=11 // pred_region
          _
        $region20: #{tpu_custom_call.1} parent=11 // pred_fallthru
          _
        // Predicated region
        $region21: #{tpu_custom_call.1} parent=11 // pred_check
          %p374 = pneg %p170
        $region22: #{tpu_custom_call.1} parent=11 // pred_check_branch
          %376 = sbr.rel (%p374) target = $region24
        $region23: #{tpu_custom_call.1} parent=11 // pred_region
          _
        $region24: #{tpu_custom_call.1} parent=11 // pred_fallthru
          _
        // Predicated region
        $region25: #{tpu_custom_call.1} parent=11 // pred_check
          %p377 = pneg %p191
        $region26: #{tpu_custom_call.1} parent=11 // pred_check_branch
          %379 = sbr.rel (%p377) target = $region28
        $region27: #{tpu_custom_call.1} parent=11 // pred_region
          _
        $region28: #{tpu_custom_call.1} parent=11 // pred_fallthru
          _
        // Predicated region
        $region29: #{tpu_custom_call.1} parent=11 // pred_check
          %p380 = pneg %p212
        $region30: #{tpu_custom_call.1} parent=11 // pred_check_branch
          %382 = sbr.rel (%p380) target = $region32
        $region31: #{tpu_custom_call.1} parent=11 // pred_region
          _
        $region32: #{tpu_custom_call.1} parent=11 // pred_fallthru
          _
        // Predicated region
        $region33: #{tpu_custom_call.1} parent=11 // pred_check
          %p383 = pneg %p233
        $region34: #{tpu_custom_call.1} parent=11 // pred_check_branch
          %385 = sbr.rel (%p383) target = $region36
        $region35: #{tpu_custom_call.1} parent=11 // pred_region
          _
        $region36: #{tpu_custom_call.1} parent=11 // pred_fallthru
          _
        // Predicated region
        $region37: #{tpu_custom_call.1} parent=11 // pred_check
          %p386 = pneg %p254
        $region38: #{tpu_custom_call.1} parent=11 // pred_check_branch
          %388 = sbr.rel (%p386) target = $region40
        $region39: #{tpu_custom_call.1} parent=11 // pred_region
          _
        $region40: #{tpu_custom_call.1} parent=11 // pred_fallthru
          _
        // Predicated region
        $region41: #{tpu_custom_call.1} parent=11 // pred_check
          %p389 = pneg %p275
        $region42: #{tpu_custom_call.1} parent=11 // pred_check_branch
          %391 = sbr.rel (%p389) target = $region44
        $region43: #{tpu_custom_call.1} parent=11 // pred_region
          _
        $region44: #{tpu_custom_call.1} parent=11 // pred_fallthru
          _
      $region12: #{tpu_custom_call.1} parent=5 // pred_fallthru
        _
      %p392 = scmp.lt.s32.totalorder %s29, 2
      // Predicated region
      $region45: #{tpu_custom_call.1} parent=5 // pred_check
        %p393 = pneg %p392
      $region46: #{tpu_custom_call.1} parent=5 // pred_check_branch
        %395 = sbr.rel (%p393) target = $region48
      $region47: #{tpu_custom_call.1} parent=5 // pred_region
        // Predicated region
        $region49: #{tpu_custom_call.1} parent=47 // pred_check
          %p396 = pneg %p49
        $region50: #{tpu_custom_call.1} parent=47 // pred_check_branch
          %398 = sbr.rel (%p396) target = $region52
        $region51: #{tpu_custom_call.1} parent=47 // pred_region
          %s399 = smul.u32 4, %s29
          %p400 = scmp.lt.s32.totalorder %s399, 7
          %s401 = scalar_select %p400, %s399, 7
          %s402 = smul.addr %s401, 2
          %s403 = smul.addr %s402, 8
          %s404 = scalar_lea.vmem %s0, %s403
          %s405 = smul.u32 4, %s29
        $region52: #{tpu_custom_call.1} parent=47 // pred_fallthru
          _
        // Predicated region
        $region53: #{tpu_custom_call.1} parent=47 // pred_check
          %p406 = pneg %p75
        $region54: #{tpu_custom_call.1} parent=47 // pred_check_branch
          %408 = sbr.rel (%p406) target = $region56
        $region55: #{tpu_custom_call.1} parent=47 // pred_region
          %s409 = sand.u32 %s65, 1
          %s410 = scalar_lea.sflag [#allocation3], %s409
          %s411 = sand.u32 %s65, 1
          %s412 = smul.addr %s411, 64
          %s413 = scalar_lea.vmem [#allocation2], %s412
          %s414 = smul.u32 4, %s29
          %s416 = ssub.s32 1024, 1024
          %417 = vsyncadd %s410, %s416
          %s418 = smul.addr %s414, 2
          %s419 = smul.addr %s418, 128
          %s420 = scalar_lea.hbm %s1, %s419
          %s421 = sshll.u32 %s413, 4
          %s422 = int_to_ptr.vmem [resolvable:$true] %s421
          %427 = dma.hbm_to_vmem [thread:$0]  %s420, 1024, %s422, %s410, 128, 128, 8
        $region56: #{tpu_custom_call.1} parent=47 // pred_fallthru
          _
        // Predicated region
        $region57: #{tpu_custom_call.1} parent=47 // pred_check
          %p428 = pneg %p101
        $region58: #{tpu_custom_call.1} parent=47 // pred_check_branch
          %430 = sbr.rel (%p428) target = $region60
        $region59: #{tpu_custom_call.1} parent=47 // pred_region
          %s431 = smul.u32 4, %s29
          %p432 = scmp.lt.s32.totalorder %s431, 7
          %s433 = scalar_select %p432, %s431, 7
          %s434 = smul.addr %s433, 2
          %s435 = smul.addr %s434, 8
          %s436 = scalar_lea.vmem %s2, %s435
          %s437 = smul.u32 4, %s29
        $region60: #{tpu_custom_call.1} parent=47 // pred_fallthru
          _
      $region48: #{tpu_custom_call.1} parent=5 // pred_fallthru
        _
      %p438 = scmp.le.s32.totalorder 1, %s29
      %p439 = scmp.lt.s32.totalorder %s29, 3
      %p440 = pnand %p438, %p439
      %p441 = pneg %p440
      // Predicated region
      $region61: #{tpu_custom_call.1} parent=5 // pred_check
        _
      $region62: #{tpu_custom_call.1} parent=5 // pred_check_branch
        %443 = sbr.rel (%p440) target = $region64
      $region63: #{tpu_custom_call.1} parent=5 // pred_region
        %s444 = ssub.s32 %s29, 1
        %s445 = sand.u32 %s68, 1
        %s446 = scalar_lea.sflag [#allocation3], %s445
        %s447 = sand.u32 %s68, 1
        %s448 = smul.addr %s447, 64
        %s449 = scalar_lea.vmem [#allocation2], %s448
        // Predicated region
        $region65: #{tpu_custom_call.1} parent=63 // pred_check
          %p450 = pneg %p81
        $region66: #{tpu_custom_call.1} parent=63 // pred_check_branch
          %452 = sbr.rel (%p450) target = $region68
        $region67: #{tpu_custom_call.1} parent=63 // pred_region
          %453 = dma.done %s446, 1024
        $region68: #{tpu_custom_call.1} parent=63 // pred_fallthru
          _
        %s454 = smul.u32 4, %s34
        %p455 = scmp.lt.s32.totalorder %s454, 7
        %s456 = scalar_select %p455, %s454, 7
        %s457 = smul.addr %s456, 2
        %s458 = smul.addr %s457, 8
        %s459 = scalar_lea.vmem %s0, %s458
        %p460 = pneg %p55
        %p461 = pneg %p52
        %s462 = sand.u32 %s68, 1
        %s463 = scalar_lea.sflag [#allocation3], %s462
        %s464 = sand.u32 %s68, 1
        %s465 = smul.addr %s464, 64
        %s466 = scalar_lea.vmem [#allocation2], %s465
        %p467 = pneg %p81
        %p468 = pneg %p78
        %s469 = smul.u32 4, %s34
        %p470 = scmp.lt.s32.totalorder %s469, 7
        %s471 = scalar_select %p470, %s469, 7
        %s472 = smul.addr %s471, 2
        %s473 = smul.addr %s472, 8
        %s474 = scalar_lea.vmem %s2, %s473
        %p475 = pneg %p107
        %p476 = pneg %p104
        %p477 = pneg %p128
        %p478 = pneg %p125
        %p479 = pneg %p149
        %p480 = pneg %p146
        %p481 = pneg %p170
        %p482 = pneg %p167
        %p483 = pneg %p191
        %p484 = pneg %p188
        %p485 = pneg %p212
        %p486 = pneg %p209
        %p487 = pneg %p233
        %p488 = pneg %p230
        %p489 = pneg %p254
        %p490 = pneg %p251
        %p491 = pneg %p275
        %p492 = pneg %p272
        %p493 = pneg %p301
        %p494 = pneg %p298
        %s495 = smul.u32 4, %s34
        %p496 = scmp.lt.s32.totalorder %s495, 7
        %s497 = scalar_select %p496, %s495, 7
        %s498 = smul.addr %s497, 4
        %s499 = smul.addr %s498, 8
        %s500 = scalar_lea.vmem %s11, %s499
        %p501 = pneg %p327
        %p502 = pneg %p324
        %s503 = sand.u32 %s314, 1
        %s504 = scalar_lea.sflag [#allocation4], %s503
        %s505 = sand.u32 %s314, 1
        %s506 = smul.addr %s505, 64
        %s507 = scalar_lea.vmem [#allocation5], %s506
        %p508 = pneg %p353
        %p509 = pneg %p350
        %s510 = sand.u32 %s340, 1
        %s511 = scalar_lea.sflag [#allocation7], %s510
        %s512 = sand.u32 %s340, 1
        %s513 = smul.addr %s512, 32
        %s514 = scalar_lea.vmem [#allocation6], %s513
        %s515 = smul.u32 4, %s34
        %p516 = scmp.lt.s32.totalorder %s515, 7
        %s517 = scalar_select %p516, %s515, 7
        %s518 = smul.addr %s517, 2
        %s519 = smul.addr %s518, 8
        %s520 = scalar_lea.vmem %s0, %s519
        %s521 = smul.u32 4, %s34
        %s522 = smul.u32 4, %s34
        %s523 = smul.u32 4, %s34
        %p524 = scmp.lt.s32.totalorder %s523, 7
        %s525 = scalar_select %p524, %s523, 7
        %s526 = smul.addr %s525, 2
        %s527 = smul.addr %s526, 8
        %s528 = scalar_lea.vmem %s2, %s527
        %s529 = smul.u32 4, %s34
        %s530 = smul.u32 4, %s34
        %p531 = scmp.lt.s32.totalorder %s530, 7
        %s532 = scalar_select %p531, %s530, 7
        %s533 = smul.addr %s532, 4
        %s534 = smul.addr %s533, 8
        %s535 = scalar_lea.vmem %s11, %s534
        %s536 = smul.u32 4, %s34
        %s537 = smul.u32 4, %s34
        %s538 = smul.u32 4, %s34
        %v539 = vld [vmem:[%s528] sm:$0xff]
        %v540 = vld [vmem:[%s528 + $0x8] sm:$0xff]
        %v541 = vld [vmem:[%s528 + $0x10] sm:$0xff]
        %v542 = vld [vmem:[%s528 + $0x18] sm:$0xff]
        %v543 = vld [vmem:[%s528 + $0x20] sm:$0xff]
        %v544 = vld [vmem:[%s528 + $0x28] sm:$0xff]
        %v545 = vld [vmem:[%s528 + $0x30] sm:$0xff]
        %v546 = vld [vmem:[%s528 + $0x38] sm:$0xff]
        %547 = vxpose.xlu0.b32.start [1/16] %v539, 128
        %548 = vxpose.xlu0.b32.cont [2/16] %v540, 128
        %549 = vxpose.xlu0.b32.cont [3/16] 0.0, 128
        %550 = vxpose.xlu0.b32.cont [4/16] 0.0, 128
        %551 = vxpose.xlu0.b32.cont [5/16] 0.0, 128
        %552 = vxpose.xlu0.b32.cont [6/16] 0.0, 128
        %553 = vxpose.xlu0.b32.cont [7/16] 0.0, 128
        %554 = vxpose.xlu0.b32.cont [8/16] 0.0, 128
        %555 = vxpose.xlu0.b32.cont [9/16] 0.0, 128
        %556 = vxpose.xlu0.b32.cont [10/16] 0.0, 128
        %557 = vxpose.xlu0.b32.cont [11/16] 0.0, 128
        %558 = vxpose.xlu0.b32.cont [12/16] 0.0, 128
        %559 = vxpose.xlu0.b32.cont [13/16] 0.0, 128
        %560 = vxpose.xlu0.b32.cont [14/16] 0.0, 128
        %561 = vxpose.xlu0.b32.cont [15/16] 0.0, 128
        %562 = vxpose.xlu0.b32.end [16/16] 0.0, 128
        %v563 = vpop.trf.xlu0
        %v564 = vpop.trf.xlu0
        %v565 = vpop.trf.xlu0
        %v566 = vpop.trf.xlu0
        %v567 = vpop.trf.xlu0
        %v568 = vpop.trf.xlu0
        %v569 = vpop.trf.xlu0
        %v570 = vpop.trf.xlu0
        %v571 = vpop.trf.xlu0
        %v572 = vpop.trf.xlu0
        %v573 = vpop.trf.xlu0
        %v574 = vpop.trf.xlu0
        %v575 = vpop.trf.xlu0
        %v576 = vpop.trf.xlu0
        %v577 = vpop.trf.xlu0
        %v578 = vpop.trf.xlu0
        %579 = vxpose.xlu0.b32.start [1/16] %v541, 128
        %580 = vxpose.xlu0.b32.cont [2/16] %v542, 128
        %581 = vxpose.xlu0.b32.cont [3/16] 0.0, 128
        %582 = vxpose.xlu0.b32.cont [4/16] 0.0, 128
        %583 = vxpose.xlu0.b32.cont [5/16] 0.0, 128
        %584 = vxpose.xlu0.b32.cont [6/16] 0.0, 128
        %585 = vxpose.xlu0.b32.cont [7/16] 0.0, 128
        %586 = vxpose.xlu0.b32.cont [8/16] 0.0, 128
        %587 = vxpose.xlu0.b32.cont [9/16] 0.0, 128
        %588 = vxpose.xlu0.b32.cont [10/16] 0.0, 128
        %589 = vxpose.xlu0.b32.cont [11/16] 0.0, 128
        %590 = vxpose.xlu0.b32.cont [12/16] 0.0, 128
        %591 = vxpose.xlu0.b32.cont [13/16] 0.0, 128
        %592 = vxpose.xlu0.b32.cont [14/16] 0.0, 128
        %593 = vxpose.xlu0.b32.cont [15/16] 0.0, 128
        %594 = vxpose.xlu0.b32.end [16/16] 0.0, 128
        %v595 = vpop.trf.xlu0
        %v596 = vpop.trf.xlu0
        %v597 = vpop.trf.xlu0
        %v598 = vpop.trf.xlu0
        %v599 = vpop.trf.xlu0
        %v600 = vpop.trf.xlu0
        %v601 = vpop.trf.xlu0
        %v602 = vpop.trf.xlu0
        %v603 = vpop.trf.xlu0
        %v604 = vpop.trf.xlu0
        %v605 = vpop.trf.xlu0
        %v606 = vpop.trf.xlu0
        %v607 = vpop.trf.xlu0
        %v608 = vpop.trf.xlu0
        %v609 = vpop.trf.xlu0
        %v610 = vpop.trf.xlu0
        %611 = vxpose.xlu0.b32.start [1/16] %v543, 128
        %612 = vxpose.xlu0.b32.cont [2/16] %v544, 128
        %613 = vxpose.xlu0.b32.cont [3/16] 0.0, 128
        %614 = vxpose.xlu0.b32.cont [4/16] 0.0, 128
        %615 = vxpose.xlu0.b32.cont [5/16] 0.0, 128
        %616 = vxpose.xlu0.b32.cont [6/16] 0.0, 128
        %617 = vxpose.xlu0.b32.cont [7/16] 0.0, 128
        %618 = vxpose.xlu0.b32.cont [8/16] 0.0, 128
        %619 = vxpose.xlu0.b32.cont [9/16] 0.0, 128
        %620 = vxpose.xlu0.b32.cont [10/16] 0.0, 128
        %621 = vxpose.xlu0.b32.cont [11/16] 0.0, 128
        %622 = vxpose.xlu0.b32.cont [12/16] 0.0, 128
        %623 = vxpose.xlu0.b32.cont [13/16] 0.0, 128
        %624 = vxpose.xlu0.b32.cont [14/16] 0.0, 128
        %625 = vxpose.xlu0.b32.cont [15/16] 0.0, 128
        %626 = vxpose.xlu0.b32.end [16/16] 0.0, 128
        %v627 = vpop.trf.xlu0
        %v628 = vpop.trf.xlu0
        %v629 = vpop.trf.xlu0
        %v630 = vpop.trf.xlu0
        %v631 = vpop.trf.xlu0
        %v632 = vpop.trf.xlu0
        %v633 = vpop.trf.xlu0
        %v634 = vpop.trf.xlu0
        %v635 = vpop.trf.xlu0
        %v636 = vpop.trf.xlu0
        %v637 = vpop.trf.xlu0
        %v638 = vpop.trf.xlu0
        %v639 = vpop.trf.xlu0
        %v640 = vpop.trf.xlu0
        %v641 = vpop.trf.xlu0
        %v642 = vpop.trf.xlu0
        %643 = vxpose.xlu0.b32.start [1/16] %v545, 128
        %644 = vxpose.xlu0.b32.cont [2/16] %v546, 128
        %645 = vxpose.xlu0.b32.cont [3/16] 0.0, 128
        %646 = vxpose.xlu0.b32.cont [4/16] 0.0, 128
        %647 = vxpose.xlu0.b32.cont [5/16] 0.0, 128
        %648 = vxpose.xlu0.b32.cont [6/16] 0.0, 128
        %649 = vxpose.xlu0.b32.cont [7/16] 0.0, 128
        %650 = vxpose.xlu0.b32.cont [8/16] 0.0, 128
        %651 = vxpose.xlu0.b32.cont [9/16] 0.0, 128
        %652 = vxpose.xlu0.b32.cont [10/16] 0.0, 128
        %653 = vxpose.xlu0.b32.cont [11/16] 0.0, 128
        %654 = vxpose.xlu0.b32.cont [12/16] 0.0, 128
        %655 = vxpose.xlu0.b32.cont [13/16] 0.0, 128
        %656 = vxpose.xlu0.b32.cont [14/16] 0.0, 128
        %657 = vxpose.xlu0.b32.cont [15/16] 0.0, 128
        %658 = vxpose.xlu0.b32.end [16/16] 0.0, 128
        %v659 = vpop.trf.xlu0
        %v660 = vpop.trf.xlu0
        %v661 = vpop.trf.xlu0
        %v662 = vpop.trf.xlu0
        %v663 = vpop.trf.xlu0
        %v664 = vpop.trf.xlu0
        %v665 = vpop.trf.xlu0
        %v666 = vpop.trf.xlu0
        %v667 = vpop.trf.xlu0
        %v668 = vpop.trf.xlu0
        %v669 = vpop.trf.xlu0
        %v670 = vpop.trf.xlu0
        %v671 = vpop.trf.xlu0
        %v672 = vpop.trf.xlu0
        %v673 = vpop.trf.xlu0
        %v674 = vpop.trf.xlu0
        %vm675 = vcmask 130048
        %676 = vst.msk [vmem:[%s514] sm:$0xff] %vm675, %v563
        %677 = vst.msk [vmem:[%s514 + $0x8] sm:$0xff] %vm675, %v595
        %678 = vst.msk [vmem:[%s514 + $0x10] sm:$0xff] %vm675, %v627
        %679 = vst.msk [vmem:[%s514 + $0x18] sm:$0xff] %vm675, %v659
        %v680 = vld [vmem:[%s3] sm:$0xff]
        %v681 = vld [vmem:[%s4] sm:$0x1]
        %v682 = vld [vmem:[%s5] sm:$0xff]
        %v683 = vld [vmem:[%s5 + $0x8] sm:$0xff]
        %v684 = vld [vmem:[%s6] sm:$0x1]
        %v686 = vlaneseq
        %v687 = vshrl.u32 %v686, 7
        %v688 = vsub.s32 0, %v687
        %v689 = vrot.slane %v681, %v688
        %vm691 = vcmask 64512
        %v693 = vsel %vm691, %v539, 0
        %v696 = vsel %vm691, %v540, 0
        %v699 = vsel %vm691, %v541, 0
        %v702 = vsel %vm691, %v542, 0
        %v705 = vsel %vm691, %v543, 0
        %v708 = vsel %vm691, %v544, 0
        %v711 = vsel %vm691, %v545, 0
        %v714 = vsel %vm691, %v546, 0
        %716 = vmatprep.subr.mxu0 0.0
        %717 = vmatpush1.msra.mxu0 %v680
        %718 = vmatprep.subr.mxu0 0.0
        %719 = vmatpush1.msra.mxu0 0.0
        %720 = vmatprep.subr.mxu0 0.0
        %721 = vmatpush1.msra.mxu0 0.0
        %722 = vmatprep.subr.mxu0 0.0
        %723 = vmatpush1.msra.mxu0 0.0
        %724 = vmatprep.subr.mxu0 0.0
        %725 = vmatpush1.msra.mxu0 0.0
        %726 = vmatprep.subr.mxu0 0.0
        %727 = vmatpush1.msra.mxu0 0.0
        %728 = vmatprep.subr.mxu0 0.0
        %729 = vmatpush1.msra.mxu0 0.0
        %730 = vmatprep.subr.mxu0 0.0
        %731 = vmatpush1.msra.mxu0 0.0
        %732 = vmatprep.subr.mxu0 0.0
        %733 = vmatpush1.msra.mxu0 0.0
        %734 = vmatprep.subr.mxu0 0.0
        %735 = vmatpush1.msra.mxu0 0.0
        %736 = vmatprep.subr.mxu0 0.0
        %737 = vmatpush1.msra.mxu0 0.0
        %738 = vmatprep.subr.mxu0 0.0
        %739 = vmatpush1.msra.mxu0 0.0
        %740 = vmatprep.subr.mxu0 0.0
        %741 = vmatpush1.msra.mxu0 0.0
        %742 = vmatprep.subr.mxu0 0.0
        %743 = vmatpush1.msra.mxu0 0.0
        %744 = vmatprep.subr.mxu0 0.0
        %745 = vmatpush1.msra.mxu0 0.0
        %746 = vmatprep.subr.mxu0 0.0
        %747 = vmatpush1.msra.mxu0 0.0
        %748 = vmatprep.subr.mxu0 0.0
        %749 = vmatpush1.msra.mxu0 0.0
        %750 = vmatprep.subr.mxu0 0.0
        %751 = vmatpush1.msra.mxu0 0.0
        %752 = vmatprep.subr.mxu0 0.0
        %753 = vmatpush1.msra.mxu0 0.0
        %754 = vmatprep.subr.mxu0 0.0
        %755 = vmatpush1.msra.mxu0 0.0
        %756 = vmatprep.subr.mxu0 0.0
        %757 = vmatpush1.msra.mxu0 0.0
        %758 = vmatprep.subr.mxu0 0.0
        %759 = vmatpush1.msra.mxu0 0.0
        %760 = vmatprep.subr.mxu0 0.0
        %761 = vmatpush1.msra.mxu0 0.0
        %762 = vmatprep.subr.mxu0 0.0
        %763 = vmatpush1.msra.mxu0 0.0
        %764 = vmatprep.subr.mxu0 0.0
        %765 = vmatpush1.msra.mxu0 0.0
        %766 = vmatprep.subr.mxu0 0.0
        %767 = vmatpush1.msra.mxu0 0.0
        %768 = vmatprep.subr.mxu0 0.0
        %769 = vmatpush1.msra.mxu0 0.0
        %770 = vmatprep.subr.mxu0 0.0
        %771 = vmatpush1.msra.mxu0 0.0
        %772 = vmatprep.subr.mxu0 0.0
        %773 = vmatpush1.msra.mxu0 0.0
        %774 = vmatprep.subr.mxu0 0.0
        %775 = vmatpush1.msra.mxu0 0.0
        %776 = vmatprep.subr.mxu0 0.0
        %777 = vmatpush1.msra.mxu0 0.0
        %778 = vmatprep.subr.mxu0 0.0
        %779 = vmatpush1.msra.mxu0 0.0
        %780 = vmatprep.mubr.f32.mxu0 0.0
        %781 = vmatmul.mubr.f32.gmra.mrb[0].mxu0 %v693
        %v782 = vpop.f32.mrb[0].mxu0
        %v783 = vadd.f32 %v689, %v782
        %v784 = vpop.f32.mrb[0].mxu0
        %785 = vmatprep.mubr.f32.mxu0 0.0
        %786 = vmatmul.mubr.f32.gmra.mrb[0].mxu0 %v696
        %v787 = vpop.f32.mrb[0].mxu0
        %v788 = vadd.f32 %v689, %v787
        %v789 = vpop.f32.mrb[0].mxu0
        %790 = vmatprep.mubr.f32.mxu0 0.0
        %791 = vmatmul.mubr.f32.gmra.mrb[0].mxu0 %v699
        %v792 = vpop.f32.mrb[0].mxu0
        %v793 = vadd.f32 %v689, %v792
        %v794 = vpop.f32.mrb[0].mxu0
        %795 = vmatprep.mubr.f32.mxu0 0.0
        %796 = vmatmul.mubr.f32.gmra.mrb[0].mxu0 %v702
        %v797 = vpop.f32.mrb[0].mxu0
        %v798 = vadd.f32 %v689, %v797
        %v799 = vpop.f32.mrb[0].mxu0
        %800 = vmatprep.mubr.f32.mxu0 0.0
        %801 = vmatmul.mubr.f32.gmra.mrb[0].mxu0 %v705
        %v802 = vpop.f32.mrb[0].mxu0
        %v803 = vadd.f32 %v689, %v802
        %v804 = vpop.f32.mrb[0].mxu0
        %805 = vmatprep.mubr.f32.mxu0 0.0
        %806 = vmatmul.mubr.f32.gmra.mrb[0].mxu0 %v708
        %v807 = vpop.f32.mrb[0].mxu0
        %v808 = vadd.f32 %v689, %v807
        %v809 = vpop.f32.mrb[0].mxu0
        %810 = vmatprep.mubr.f32.mxu0 0.0
        %811 = vmatmul.mubr.f32.gmra.mrb[0].mxu0 %v711
        %v812 = vpop.f32.mrb[0].mxu0
        %v813 = vadd.f32 %v689, %v812
        %v814 = vpop.f32.mrb[0].mxu0
        %815 = vmatprep.mubr.f32.mxu0 0.0
        %816 = vmatmul.mubr.f32.gmra.mrb[0].mxu0 %v714
        %v817 = vpop.f32.mrb[0].mxu0
        %v818 = vadd.f32 %v689, %v817
        %v819 = vpop.f32.mrb[0].mxu0
        %820 = vdwg.mxu0
        %v821 = vmul.f32 %v783, 0.5
        %v822 = vmul.f32 %v788, 0.5
        %v823 = vmul.f32 %v793, 0.5
        %v824 = vmul.f32 %v798, 0.5
        %v825 = vmul.f32 %v803, 0.5
        %v826 = vmul.f32 %v808, 0.5
        %v827 = vmul.f32 %v813, 0.5
        %v828 = vmul.f32 %v818, 0.5
        %v829 = vmul.f32 %v783, 0.70710677
        %v830 = vmul.f32 %v788, 0.70710677
        %v831 = vmul.f32 %v793, 0.70710677
        %v832 = vmul.f32 %v798, 0.70710677
        %v833 = vmul.f32 %v803, 0.70710677
        %v834 = vmul.f32 %v808, 0.70710677
        %v835 = vmul.f32 %v813, 0.70710677
        %v836 = vmul.f32 %v818, 0.70710677
        %v837 = verf.f32.pop %v829
        %v838 = verf.f32.pop %v830
        %v839 = verf.f32.pop %v831
        %v840 = verf.f32.pop %v832
        %v841 = verf.f32.pop %v833
        %v842 = verf.f32.pop %v834
        %v843 = verf.f32.pop %v835
        %v844 = verf.f32.pop %v836
        %v845 = vadd.f32 %v837, 1.0
        %v846 = vadd.f32 %v838, 1.0
        %v847 = vadd.f32 %v839, 1.0
        %v848 = vadd.f32 %v840, 1.0
        %v849 = vadd.f32 %v841, 1.0
        %v850 = vadd.f32 %v842, 1.0
        %v851 = vadd.f32 %v843, 1.0
        %v852 = vadd.f32 %v844, 1.0
        %v853 = vmul.f32 %v821, %v845
        %v854 = vmul.f32 %v822, %v846
        %v855 = vmul.f32 %v823, %v847
        %v856 = vmul.f32 %v824, %v848
        %v857 = vmul.f32 %v825, %v849
        %v858 = vmul.f32 %v826, %v850
        %v859 = vmul.f32 %v827, %v851
        %v860 = vmul.f32 %v828, %v852
        %v862 = vlaneseq
        %v863 = vshrl.u32 %v862, 7
        %v864 = vsub.s32 0, %v863
        %v865 = vrot.slane %v684, %v864
        %v868 = vsel %vm675, %v853, 0
        %v871 = vsel %vm675, %v854, 0
        %v874 = vsel %vm675, %v855, 0
        %v877 = vsel %vm675, %v856, 0
        %v880 = vsel %vm675, %v857, 0
        %v883 = vsel %vm675, %v858, 0
        %v886 = vsel %vm675, %v859, 0
        %v889 = vsel %vm675, %v860, 0
        %891 = vmatprep.subr.mxu0 0.0
        %892 = vmatpush1.msra.mxu0 %v682
        %893 = vmatprep.subr.mxu0 0.0
        %894 = vmatpush1.msra.mxu0 %v683
        %895 = vmatprep.subr.mxu0 0.0
        %896 = vmatpush1.msra.mxu0 0.0
        %897 = vmatprep.subr.mxu0 0.0
        %898 = vmatpush1.msra.mxu0 0.0
        %899 = vmatprep.subr.mxu0 0.0
        %900 = vmatpush1.msra.mxu0 0.0
        %901 = vmatprep.subr.mxu0 0.0
        %902 = vmatpush1.msra.mxu0 0.0
        %903 = vmatprep.subr.mxu0 0.0
        %904 = vmatpush1.msra.mxu0 0.0
        %905 = vmatprep.subr.mxu0 0.0
        %906 = vmatpush1.msra.mxu0 0.0
        %907 = vmatprep.subr.mxu0 0.0
        %908 = vmatpush1.msra.mxu0 0.0
        %909 = vmatprep.subr.mxu0 0.0
        %910 = vmatpush1.msra.mxu0 0.0
        %911 = vmatprep.subr.mxu0 0.0
        %912 = vmatpush1.msra.mxu0 0.0
        %913 = vmatprep.subr.mxu0 0.0
        %914 = vmatpush1.msra.mxu0 0.0
        %915 = vmatprep.subr.mxu0 0.0
        %916 = vmatpush1.msra.mxu0 0.0
        %917 = vmatprep.subr.mxu0 0.0
        %918 = vmatpush1.msra.mxu0 0.0
        %919 = vmatprep.subr.mxu0 0.0
        %920 = vmatpush1.msra.mxu0 0.0
        %921 = vmatprep.subr.mxu0 0.0
        %922 = vmatpush1.msra.mxu0 0.0
        %923 = vmatprep.subr.mxu0 0.0
        %924 = vmatpush1.msra.mxu0 0.0
        %925 = vmatprep.subr.mxu0 0.0
        %926 = vmatpush1.msra.mxu0 0.0
        %927 = vmatprep.subr.mxu0 0.0
        %928 = vmatpush1.msra.mxu0 0.0
        %929 = vmatprep.subr.mxu0 0.0
        %930 = vmatpush1.msra.mxu0 0.0
        %931 = vmatprep.subr.mxu0 0.0
        %932 = vmatpush1.msra.mxu0 0.0
        %933 = vmatprep.subr.mxu0 0.0
        %934 = vmatpush1.msra.mxu0 0.0
        %935 = vmatprep.subr.mxu0 0.0
        %936 = vmatpush1.msra.mxu0 0.0
        %937 = vmatprep.subr.mxu0 0.0
        %938 = vmatpush1.msra.mxu0 0.0
        %939 = vmatprep.subr.mxu0 0.0
        %940 = vmatpush1.msra.mxu0 0.0
        %941 = vmatprep.subr.mxu0 0.0
        %942 = vmatpush1.msra.mxu0 0.0
        %943 = vmatprep.subr.mxu0 0.0
        %944 = vmatpush1.msra.mxu0 0.0
        %945 = vmatprep.subr.mxu0 0.0
        %946 = vmatpush1.msra.mxu0 0.0
        %947 = vmatprep.subr.mxu0 0.0
        %948 = vmatpush1.msra.mxu0 0.0
        %949 = vmatprep.subr.mxu0 0.0
        %950 = vmatpush1.msra.mxu0 0.0
        %951 = vmatprep.subr.mxu0 0.0
        %952 = vmatpush1.msra.mxu0 0.0
        %953 = vmatprep.subr.mxu0 0.0
        %954 = vmatpush1.msra.mxu0 0.0
        %955 = vmatprep.mubr.f32.mxu0 0.0
        %956 = vmatmul.mubr.f32.gmra.mrb[0].mxu0 %v868
        %v957 = vpop.f32.mrb[0].mxu0
        %v958 = vadd.f32 %v865, %v957
        %v959 = vpop.f32.mrb[0].mxu0
        %960 = vmatprep.mubr.f32.mxu0 0.0
        %961 = vmatmul.mubr.f32.gmra.mrb[0].mxu0 %v871
        %v962 = vpop.f32.mrb[0].mxu0
        %v963 = vadd.f32 %v865, %v962
        %v964 = vpop.f32.mrb[0].mxu0
        %965 = vmatprep.mubr.f32.mxu0 0.0
        %966 = vmatmul.mubr.f32.gmra.mrb[0].mxu0 %v874
        %v967 = vpop.f32.mrb[0].mxu0
        %v968 = vadd.f32 %v865, %v967
        %v969 = vpop.f32.mrb[0].mxu0
        %970 = vmatprep.mubr.f32.mxu0 0.0
        %971 = vmatmul.mubr.f32.gmra.mrb[0].mxu0 %v877
        %v972 = vpop.f32.mrb[0].mxu0
        %v973 = vadd.f32 %v865, %v972
        %v974 = vpop.f32.mrb[0].mxu0
        %975 = vmatprep.mubr.f32.mxu0 0.0
        %976 = vmatmul.mubr.f32.gmra.mrb[0].mxu0 %v880
        %v977 = vpop.f32.mrb[0].mxu0
        %v978 = vadd.f32 %v865, %v977
        %v979 = vpop.f32.mrb[0].mxu0
        %980 = vmatprep.mubr.f32.mxu0 0.0
        %981 = vmatmul.mubr.f32.gmra.mrb[0].mxu0 %v883
        %v982 = vpop.f32.mrb[0].mxu0
        %v983 = vadd.f32 %v865, %v982
        %v984 = vpop.f32.mrb[0].mxu0
        %985 = vmatprep.mubr.f32.mxu0 0.0
        %986 = vmatmul.mubr.f32.gmra.mrb[0].mxu0 %v886
        %v987 = vpop.f32.mrb[0].mxu0
        %v988 = vadd.f32 %v865, %v987
        %v989 = vpop.f32.mrb[0].mxu0
        %990 = vmatprep.mubr.f32.mxu0 0.0
        %991 = vmatmul.mubr.f32.gmra.mrb[0].mxu0 %v889
        %v992 = vpop.f32.mrb[0].mxu0
        %v993 = vadd.f32 %v865, %v992
        %v994 = vpop.f32.mrb[0].mxu0
        %995 = vdwg.mxu0
        %v996 = vld [vmem:[%s449] sm:$0xff]
        %v997 = vld [vmem:[%s449 + $0x8] sm:$0xff]
        %v998 = vld [vmem:[%s449 + $0x10] sm:$0xff]
        %v999 = vld [vmem:[%s449 + $0x18] sm:$0xff]
        %v1000 = vld [vmem:[%s449 + $0x20] sm:$0xff]
        %v1001 = vld [vmem:[%s449 + $0x28] sm:$0xff]
        %v1002 = vld [vmem:[%s449 + $0x30] sm:$0xff]
        %v1003 = vld [vmem:[%s449 + $0x38] sm:$0xff]
        %v1004 = vadd.f32 %v996, %v958
        %v1005 = vadd.f32 %v997, %v963
        %v1006 = vadd.f32 %v998, %v968
        %v1007 = vadd.f32 %v999, %v973
        %v1008 = vadd.f32 %v1000, %v978
        %v1009 = vadd.f32 %v1001, %v983
        %v1010 = vadd.f32 %v1002, %v988
        %v1011 = vadd.f32 %v1003, %v993
        %1012 = vxpose.xlu0.b32.start [1/16] %v1004, 128
        %1013 = vxpose.xlu0.b32.cont [2/16] %v1005, 128
        %1014 = vxpose.xlu0.b32.cont [3/16] 0.0, 128
        %1015 = vxpose.xlu0.b32.cont [4/16] 0.0, 128
        %1016 = vxpose.xlu0.b32.cont [5/16] 0.0, 128
        %1017 = vxpose.xlu0.b32.cont [6/16] 0.0, 128
        %1018 = vxpose.xlu0.b32.cont [7/16] 0.0, 128
        %1019 = vxpose.xlu0.b32.cont [8/16] 0.0, 128
        %1020 = vxpose.xlu0.b32.cont [9/16] 0.0, 128
        %1021 = vxpose.xlu0.b32.cont [10/16] 0.0, 128
        %1022 = vxpose.xlu0.b32.cont [11/16] 0.0, 128
        %1023 = vxpose.xlu0.b32.cont [12/16] 0.0, 128
        %1024 = vxpose.xlu0.b32.cont [13/16] 0.0, 128
        %1025 = vxpose.xlu0.b32.cont [14/16] 0.0, 128
        %1026 = vxpose.xlu0.b32.cont [15/16] 0.0, 128
        %1027 = vxpose.xlu0.b32.end [16/16] 0.0, 128
        %v1028 = vpop.trf.xlu0
        %v1029 = vpop.trf.xlu0
        %v1030 = vpop.trf.xlu0
        %v1031 = vpop.trf.xlu0
        %v1032 = vpop.trf.xlu0
        %v1033 = vpop.trf.xlu0
        %v1034 = vpop.trf.xlu0
        %v1035 = vpop.trf.xlu0
        %v1036 = vpop.trf.xlu0
        %v1037 = vpop.trf.xlu0
        %v1038 = vpop.trf.xlu0
        %v1039 = vpop.trf.xlu0
        %v1040 = vpop.trf.xlu0
        %v1041 = vpop.trf.xlu0
        %v1042 = vpop.trf.xlu0
        %v1043 = vpop.trf.xlu0
        %1044 = vxpose.xlu0.b32.start [1/16] %v1006, 128
        %1045 = vxpose.xlu0.b32.cont [2/16] %v1007, 128
        %1046 = vxpose.xlu0.b32.cont [3/16] 0.0, 128
        %1047 = vxpose.xlu0.b32.cont [4/16] 0.0, 128
        %1048 = vxpose.xlu0.b32.cont [5/16] 0.0, 128
        %1049 = vxpose.xlu0.b32.cont [6/16] 0.0, 128
        %1050 = vxpose.xlu0.b32.cont [7/16] 0.0, 128
        %1051 = vxpose.xlu0.b32.cont [8/16] 0.0, 128
        %1052 = vxpose.xlu0.b32.cont [9/16] 0.0, 128
        %1053 = vxpose.xlu0.b32.cont [10/16] 0.0, 128
        %1054 = vxpose.xlu0.b32.cont [11/16] 0.0, 128
        %1055 = vxpose.xlu0.b32.cont [12/16] 0.0, 128
        %1056 = vxpose.xlu0.b32.cont [13/16] 0.0, 128
        %1057 = vxpose.xlu0.b32.cont [14/16] 0.0, 128
        %1058 = vxpose.xlu0.b32.cont [15/16] 0.0, 128
        %1059 = vxpose.xlu0.b32.end [16/16] 0.0, 128
        %v1060 = vpop.trf.xlu0
        %v1061 = vpop.trf.xlu0
        %v1062 = vpop.trf.xlu0
        %v1063 = vpop.trf.xlu0
        %v1064 = vpop.trf.xlu0
        %v1065 = vpop.trf.xlu0
        %v1066 = vpop.trf.xlu0
        %v1067 = vpop.trf.xlu0
        %v1068 = vpop.trf.xlu0
        %v1069 = vpop.trf.xlu0
        %v1070 = vpop.trf.xlu0
        %v1071 = vpop.trf.xlu0
        %v1072 = vpop.trf.xlu0
        %v1073 = vpop.trf.xlu0
        %v1074 = vpop.trf.xlu0
        %v1075 = vpop.trf.xlu0
        %1076 = vxpose.xlu0.b32.start [1/16] %v1008, 128
        %1077 = vxpose.xlu0.b32.cont [2/16] %v1009, 128
        %1078 = vxpose.xlu0.b32.cont [3/16] 0.0, 128
        %1079 = vxpose.xlu0.b32.cont [4/16] 0.0, 128
        %1080 = vxpose.xlu0.b32.cont [5/16] 0.0, 128
        %1081 = vxpose.xlu0.b32.cont [6/16] 0.0, 128
        %1082 = vxpose.xlu0.b32.cont [7/16] 0.0, 128
        %1083 = vxpose.xlu0.b32.cont [8/16] 0.0, 128
        %1084 = vxpose.xlu0.b32.cont [9/16] 0.0, 128
        %1085 = vxpose.xlu0.b32.cont [10/16] 0.0, 128
        %1086 = vxpose.xlu0.b32.cont [11/16] 0.0, 128
        %1087 = vxpose.xlu0.b32.cont [12/16] 0.0, 128
        %1088 = vxpose.xlu0.b32.cont [13/16] 0.0, 128
        %1089 = vxpose.xlu0.b32.cont [14/16] 0.0, 128
        %1090 = vxpose.xlu0.b32.cont [15/16] 0.0, 128
        %1091 = vxpose.xlu0.b32.end [16/16] 0.0, 128
        %v1092 = vpop.trf.xlu0
        %v1093 = vpop.trf.xlu0
        %v1094 = vpop.trf.xlu0
        %v1095 = vpop.trf.xlu0
        %v1096 = vpop.trf.xlu0
        %v1097 = vpop.trf.xlu0
        %v1098 = vpop.trf.xlu0
        %v1099 = vpop.trf.xlu0
        %v1100 = vpop.trf.xlu0
        %v1101 = vpop.trf.xlu0
        %v1102 = vpop.trf.xlu0
        %v1103 = vpop.trf.xlu0
        %v1104 = vpop.trf.xlu0
        %v1105 = vpop.trf.xlu0
        %v1106 = vpop.trf.xlu0
        %v1107 = vpop.trf.xlu0
        %1108 = vxpose.xlu0.b32.start [1/16] %v1010, 128
        %1109 = vxpose.xlu0.b32.cont [2/16] %v1011, 128
        %1110 = vxpose.xlu0.b32.cont [3/16] 0.0, 128
        %1111 = vxpose.xlu0.b32.cont [4/16] 0.0, 128
        %1112 = vxpose.xlu0.b32.cont [5/16] 0.0, 128
        %1113 = vxpose.xlu0.b32.cont [6/16] 0.0, 128
        %1114 = vxpose.xlu0.b32.cont [7/16] 0.0, 128
        %1115 = vxpose.xlu0.b32.cont [8/16] 0.0, 128
        %1116 = vxpose.xlu0.b32.cont [9/16] 0.0, 128
        %1117 = vxpose.xlu0.b32.cont [10/16] 0.0, 128
        %1118 = vxpose.xlu0.b32.cont [11/16] 0.0, 128
        %1119 = vxpose.xlu0.b32.cont [12/16] 0.0, 128
        %1120 = vxpose.xlu0.b32.cont [13/16] 0.0, 128
        %1121 = vxpose.xlu0.b32.cont [14/16] 0.0, 128
        %1122 = vxpose.xlu0.b32.cont [15/16] 0.0, 128
        %1123 = vxpose.xlu0.b32.end [16/16] 0.0, 128
        %v1124 = vpop.trf.xlu0
        %v1125 = vpop.trf.xlu0
        %v1126 = vpop.trf.xlu0
        %v1127 = vpop.trf.xlu0
        %v1128 = vpop.trf.xlu0
        %v1129 = vpop.trf.xlu0
        %v1130 = vpop.trf.xlu0
        %v1131 = vpop.trf.xlu0
        %v1132 = vpop.trf.xlu0
        %v1133 = vpop.trf.xlu0
        %v1134 = vpop.trf.xlu0
        %v1135 = vpop.trf.xlu0
        %v1136 = vpop.trf.xlu0
        %v1137 = vpop.trf.xlu0
        %v1138 = vpop.trf.xlu0
        %v1139 = vpop.trf.xlu0
        %1140 = vst.msk [vmem:[%s507] sm:$0xff] %vm675, %v1028
        %1141 = vst.msk [vmem:[%s507 + $0x8] sm:$0xff] %vm675, %v1029
        %1142 = vst.msk [vmem:[%s507 + $0x10] sm:$0xff] %vm675, %v1060
        %1143 = vst.msk [vmem:[%s507 + $0x18] sm:$0xff] %vm675, %v1061
        %1144 = vst.msk [vmem:[%s507 + $0x20] sm:$0xff] %vm675, %v1092
        %1145 = vst.msk [vmem:[%s507 + $0x28] sm:$0xff] %vm675, %v1093
        %1146 = vst.msk [vmem:[%s507 + $0x30] sm:$0xff] %vm675, %v1124
        %1147 = vst.msk [vmem:[%s507 + $0x38] sm:$0xff] %vm675, %v1125
        %v1148 = vld [vmem:[%s7] sm:$0xff]
        %v1149 = vld [vmem:[%s7 + $0x8] sm:$0xff]
        %v1150 = vld [vmem:[%s8] sm:$0x1]
        %v1151 = vld [vmem:[%s9] sm:$0xff]
        %v1152 = vld [vmem:[%s9 + $0x8] sm:$0xff]
        %v1153 = vld [vmem:[%s9 + $0x10] sm:$0xff]
        %v1154 = vld [vmem:[%s9 + $0x18] sm:$0xff]
        %v1155 = vld [vmem:[%s10] sm:$0x1]
        %v1157 = vlaneseq
        %v1158 = vshrl.u32 %v1157, 7
        %v1159 = vsub.s32 0, %v1158
        %v1160 = vrot.slane %v1150, %v1159
        %v1163 = vsel %vm675, %v1004, 0
        %v1166 = vsel %vm675, %v1005, 0
        %v1169 = vsel %vm675, %v1006, 0
        %v1172 = vsel %vm675, %v1007, 0
        %v1175 = vsel %vm675, %v1008, 0
        %v1178 = vsel %vm675, %v1009, 0
        %v1181 = vsel %vm675, %v1010, 0
        %v1184 = vsel %vm675, %v1011, 0
        %1186 = vmatprep.subr.mxu0 0.0
        %1187 = vmatpush1.msra.mxu0 %v1148
        %1188 = vmatprep.subr.mxu0 0.0
        %1189 = vmatpush1.msra.mxu0 %v1149
        %1190 = vmatprep.subr.mxu0 0.0
        %1191 = vmatpush1.msra.mxu0 0.0
        %1192 = vmatprep.subr.mxu0 0.0
        %1193 = vmatpush1.msra.mxu0 0.0
        %1194 = vmatprep.subr.mxu0 0.0
        %1195 = vmatpush1.msra.mxu0 0.0
        %1196 = vmatprep.subr.mxu0 0.0
        %1197 = vmatpush1.msra.mxu0 0.0
        %1198 = vmatprep.subr.mxu0 0.0
        %1199 = vmatpush1.msra.mxu0 0.0
        %1200 = vmatprep.subr.mxu0 0.0
        %1201 = vmatpush1.msra.mxu0 0.0
        %1202 = vmatprep.subr.mxu0 0.0
        %1203 = vmatpush1.msra.mxu0 0.0
        %1204 = vmatprep.subr.mxu0 0.0
        %1205 = vmatpush1.msra.mxu0 0.0
        %1206 = vmatprep.subr.mxu0 0.0
        %1207 = vmatpush1.msra.mxu0 0.0
        %1208 = vmatprep.subr.mxu0 0.0
        %1209 = vmatpush1.msra.mxu0 0.0
        %1210 = vmatprep.subr.mxu0 0.0
        %1211 = vmatpush1.msra.mxu0 0.0
        %1212 = vmatprep.subr.mxu0 0.0
        %1213 = vmatpush1.msra.mxu0 0.0
        %1214 = vmatprep.subr.mxu0 0.0
        %1215 = vmatpush1.msra.mxu0 0.0
        %1216 = vmatprep.subr.mxu0 0.0
        %1217 = vmatpush1.msra.mxu0 0.0
        %1218 = vmatprep.subr.mxu0 0.0
        %1219 = vmatpush1.msra.mxu0 0.0
        %1220 = vmatprep.subr.mxu0 0.0
        %1221 = vmatpush1.msra.mxu0 0.0
        %1222 = vmatprep.subr.mxu0 0.0
        %1223 = vmatpush1.msra.mxu0 0.0
        %1224 = vmatprep.subr.mxu0 0.0
        %1225 = vmatpush1.msra.mxu0 0.0
        %1226 = vmatprep.subr.mxu0 0.0
        %1227 = vmatpush1.msra.mxu0 0.0
        %1228 = vmatprep.subr.mxu0 0.0
        %1229 = vmatpush1.msra.mxu0 0.0
        %1230 = vmatprep.subr.mxu0 0.0
        %1231 = vmatpush1.msra.mxu0 0.0
        %1232 = vmatprep.subr.mxu0 0.0
        %1233 = vmatpush1.msra.mxu0 0.0
        %1234 = vmatprep.subr.mxu0 0.0
        %1235 = vmatpush1.msra.mxu0 0.0
        %1236 = vmatprep.subr.mxu0 0.0
        %1237 = vmatpush1.msra.mxu0 0.0
        %1238 = vmatprep.subr.mxu0 0.0
        %1239 = vmatpush1.msra.mxu0 0.0
        %1240 = vmatprep.subr.mxu0 0.0
        %1241 = vmatpush1.msra.mxu0 0.0
        %1242 = vmatprep.subr.mxu0 0.0
        %1243 = vmatpush1.msra.mxu0 0.0
        %1244 = vmatprep.subr.mxu0 0.0
        %1245 = vmatpush1.msra.mxu0 0.0
        %1246 = vmatprep.subr.mxu0 0.0
        %1247 = vmatpush1.msra.mxu0 0.0
        %1248 = vmatprep.subr.mxu0 0.0
        %1249 = vmatpush1.msra.mxu0 0.0
        %1250 = vmatprep.mubr.f32.mxu0 0.0
        %1251 = vmatmul.mubr.f32.gmra.mrb[0].mxu0 %v1163
        %v1252 = vpop.f32.mrb[0].mxu0
        %v1253 = vadd.f32 %v1160, %v1252
        %v1254 = vpop.f32.mrb[0].mxu0
        %1255 = vmatprep.mubr.f32.mxu0 0.0
        %1256 = vmatmul.mubr.f32.gmra.mrb[0].mxu0 %v1166
        %v1257 = vpop.f32.mrb[0].mxu0
        %v1258 = vadd.f32 %v1160, %v1257
        %v1259 = vpop.f32.mrb[0].mxu0
        %1260 = vmatprep.mubr.f32.mxu0 0.0
        %1261 = vmatmul.mubr.f32.gmra.mrb[0].mxu0 %v1169
        %v1262 = vpop.f32.mrb[0].mxu0
        %v1263 = vadd.f32 %v1160, %v1262
        %v1264 = vpop.f32.mrb[0].mxu0
        %1265 = vmatprep.mubr.f32.mxu0 0.0
        %1266 = vmatmul.mubr.f32.gmra.mrb[0].mxu0 %v1172
        %v1267 = vpop.f32.mrb[0].mxu0
        %v1268 = vadd.f32 %v1160, %v1267
        %v1269 = vpop.f32.mrb[0].mxu0
        %1270 = vmatprep.mubr.f32.mxu0 0.0
        %1271 = vmatmul.mubr.f32.gmra.mrb[0].mxu0 %v1175
        %v1272 = vpop.f32.mrb[0].mxu0
        %v1273 = vadd.f32 %v1160, %v1272
        %v1274 = vpop.f32.mrb[0].mxu0
        %1275 = vmatprep.mubr.f32.mxu0 0.0
        %1276 = vmatmul.mubr.f32.gmra.mrb[0].mxu0 %v1178
        %v1277 = vpop.f32.mrb[0].mxu0
        %v1278 = vadd.f32 %v1160, %v1277
        %v1279 = vpop.f32.mrb[0].mxu0
        %1280 = vmatprep.mubr.f32.mxu0 0.0
        %1281 = vmatmul.mubr.f32.gmra.mrb[0].mxu0 %v1181
        %v1282 = vpop.f32.mrb[0].mxu0
        %v1283 = vadd.f32 %v1160, %v1282
        %v1284 = vpop.f32.mrb[0].mxu0
        %1285 = vmatprep.mubr.f32.mxu0 0.0
        %1286 = vmatmul.mubr.f32.gmra.mrb[0].mxu0 %v1184
        %v1287 = vpop.f32.mrb[0].mxu0
        %v1288 = vadd.f32 %v1160, %v1287
        %v1289 = vpop.f32.mrb[0].mxu0
        %1290 = vdwg.mxu0
        %v1291 = vmul.f32 %v1253, 0.5
        %v1292 = vmul.f32 %v1258, 0.5
        %v1293 = vmul.f32 %v1263, 0.5
        %v1294 = vmul.f32 %v1268, 0.5
        %v1295 = vmul.f32 %v1273, 0.5
        %v1296 = vmul.f32 %v1278, 0.5
        %v1297 = vmul.f32 %v1283, 0.5
        %v1298 = vmul.f32 %v1288, 0.5
        %v1299 = vmul.f32 %v1253, 0.70710677
        %v1300 = vmul.f32 %v1258, 0.70710677
        %v1301 = vmul.f32 %v1263, 0.70710677
        %v1302 = vmul.f32 %v1268, 0.70710677
        %v1303 = vmul.f32 %v1273, 0.70710677
        %v1304 = vmul.f32 %v1278, 0.70710677
        %v1305 = vmul.f32 %v1283, 0.70710677
        %v1306 = vmul.f32 %v1288, 0.70710677
        %v1307 = verf.f32.pop %v1299
        %v1308 = verf.f32.pop %v1300
        %v1309 = verf.f32.pop %v1301
        %v1310 = verf.f32.pop %v1302
        %v1311 = verf.f32.pop %v1303
        %v1312 = verf.f32.pop %v1304
        %v1313 = verf.f32.pop %v1305
        %v1314 = verf.f32.pop %v1306
        %v1315 = vadd.f32 %v1307, 1.0
        %v1316 = vadd.f32 %v1308, 1.0
        %v1317 = vadd.f32 %v1309, 1.0
        %v1318 = vadd.f32 %v1310, 1.0
        %v1319 = vadd.f32 %v1311, 1.0
        %v1320 = vadd.f32 %v1312, 1.0
        %v1321 = vadd.f32 %v1313, 1.0
        %v1322 = vadd.f32 %v1314, 1.0
        %v1323 = vmul.f32 %v1291, %v1315
        %v1324 = vmul.f32 %v1292, %v1316
        %v1325 = vmul.f32 %v1293, %v1317
        %v1326 = vmul.f32 %v1294, %v1318
        %v1327 = vmul.f32 %v1295, %v1319
        %v1328 = vmul.f32 %v1296, %v1320
        %v1329 = vmul.f32 %v1297, %v1321
        %v1330 = vmul.f32 %v1298, %v1322
        %v1332 = vlaneseq
        %v1333 = vshrl.u32 %v1332, 7
        %v1334 = vsub.s32 0, %v1333
        %v1335 = vrot.slane %v1155, %v1334
        %vm1337 = vcmask 261120
        %v1339 = vsel %vm1337, %v1323, 0
        %v1342 = vsel %vm1337, %v1324, 0
        %v1345 = vsel %vm1337, %v1325, 0
        %v1348 = vsel %vm1337, %v1326, 0
        %v1351 = vsel %vm1337, %v1327, 0
        %v1354 = vsel %vm1337, %v1328, 0
        %v1357 = vsel %vm1337, %v1329, 0
        %v1360 = vsel %vm1337, %v1330, 0
        %1362 = vmatprep.subr.mxu0 0.0
        %1363 = vmatpush1.msra.mxu0 %v1151
        %1364 = vmatprep.subr.mxu0 0.0
        %1365 = vmatpush1.msra.mxu0 %v1152
        %1366 = vmatprep.subr.mxu0 0.0
        %1367 = vmatpush1.msra.mxu0 %v1153
        %1368 = vmatprep.subr.mxu0 0.0
        %1369 = vmatpush1.msra.mxu0 %v1154
        %1370 = vmatprep.subr.mxu0 0.0
        %1371 = vmatpush1.msra.mxu0 0.0
        %1372 = vmatprep.subr.mxu0 0.0
        %1373 = vmatpush1.msra.mxu0 0.0
        %1374 = vmatprep.subr.mxu0 0.0
        %1375 = vmatpush1.msra.mxu0 0.0
        %1376 = vmatprep.subr.mxu0 0.0
        %1377 = vmatpush1.msra.mxu0 0.0
        %1378 = vmatprep.subr.mxu0 0.0
        %1379 = vmatpush1.msra.mxu0 0.0
        %1380 = vmatprep.subr.mxu0 0.0
        %1381 = vmatpush1.msra.mxu0 0.0
        %1382 = vmatprep.subr.mxu0 0.0
        %1383 = vmatpush1.msra.mxu0 0.0
        %1384 = vmatprep.subr.mxu0 0.0
        %1385 = vmatpush1.msra.mxu0 0.0
        %1386 = vmatprep.subr.mxu0 0.0
        %1387 = vmatpush1.msra.mxu0 0.0
        %1388 = vmatprep.subr.mxu0 0.0
        %1389 = vmatpush1.msra.mxu0 0.0
        %1390 = vmatprep.subr.mxu0 0.0
        %1391 = vmatpush1.msra.mxu0 0.0
        %1392 = vmatprep.subr.mxu0 0.0
        %1393 = vmatpush1.msra.mxu0 0.0
        %1394 = vmatprep.subr.mxu0 0.0
        %1395 = vmatpush1.msra.mxu0 0.0
        %1396 = vmatprep.subr.mxu0 0.0
        %1397 = vmatpush1.msra.mxu0 0.0
        %1398 = vmatprep.subr.mxu0 0.0
        %1399 = vmatpush1.msra.mxu0 0.0
        %1400 = vmatprep.subr.mxu0 0.0
        %1401 = vmatpush1.msra.mxu0 0.0
        %1402 = vmatprep.subr.mxu0 0.0
        %1403 = vmatpush1.msra.mxu0 0.0
        %1404 = vmatprep.subr.mxu0 0.0
        %1405 = vmatpush1.msra.mxu0 0.0
        %1406 = vmatprep.subr.mxu0 0.0
        %1407 = vmatpush1.msra.mxu0 0.0
        %1408 = vmatprep.subr.mxu0 0.0
        %1409 = vmatpush1.msra.mxu0 0.0
        %1410 = vmatprep.subr.mxu0 0.0
        %1411 = vmatpush1.msra.mxu0 0.0
        %1412 = vmatprep.subr.mxu0 0.0
        %1413 = vmatpush1.msra.mxu0 0.0
        %1414 = vmatprep.subr.mxu0 0.0
        %1415 = vmatpush1.msra.mxu0 0.0
        %1416 = vmatprep.subr.mxu0 0.0
        %1417 = vmatpush1.msra.mxu0 0.0
        %1418 = vmatprep.subr.mxu0 0.0
        %1419 = vmatpush1.msra.mxu0 0.0
        %1420 = vmatprep.subr.mxu0 0.0
        %1421 = vmatpush1.msra.mxu0 0.0
        %1422 = vmatprep.subr.mxu0 0.0
        %1423 = vmatpush1.msra.mxu0 0.0
        %1424 = vmatprep.subr.mxu0 0.0
        %1425 = vmatpush1.msra.mxu0 0.0
        %1426 = vmatprep.mubr.f32.mxu0 0.0
        %1427 = vmatmul.mubr.f32.gmra.mrb[0].mxu0 %v1339
        %v1428 = vpop.f32.mrb[0].mxu0
        %v1429 = vadd.f32 %v1335, %v1428
        %v1430 = vpop.f32.mrb[0].mxu0
        %1431 = vmatprep.mubr.f32.mxu0 0.0
        %1432 = vmatmul.mubr.f32.gmra.mrb[0].mxu0 %v1342
        %v1433 = vpop.f32.mrb[0].mxu0
        %v1434 = vadd.f32 %v1335, %v1433
        %v1435 = vpop.f32.mrb[0].mxu0
        %1436 = vmatprep.mubr.f32.mxu0 0.0
        %1437 = vmatmul.mubr.f32.gmra.mrb[0].mxu0 %v1345
        %v1438 = vpop.f32.mrb[0].mxu0
        %v1439 = vadd.f32 %v1335, %v1438
        %v1440 = vpop.f32.mrb[0].mxu0
        %1441 = vmatprep.mubr.f32.mxu0 0.0
        %1442 = vmatmul.mubr.f32.gmra.mrb[0].mxu0 %v1348
        %v1443 = vpop.f32.mrb[0].mxu0
        %v1444 = vadd.f32 %v1335, %v1443
        %v1445 = vpop.f32.mrb[0].mxu0
        %1446 = vmatprep.mubr.f32.mxu0 0.0
        %1447 = vmatmul.mubr.f32.gmra.mrb[0].mxu0 %v1351
        %v1448 = vpop.f32.mrb[0].mxu0
        %v1449 = vadd.f32 %v1335, %v1448
        %v1450 = vpop.f32.mrb[0].mxu0
        %1451 = vmatprep.mubr.f32.mxu0 0.0
        %1452 = vmatmul.mubr.f32.gmra.mrb[0].mxu0 %v1354
        %v1453 = vpop.f32.mrb[0].mxu0
        %v1454 = vadd.f32 %v1335, %v1453
        %v1455 = vpop.f32.mrb[0].mxu0
        %1456 = vmatprep.mubr.f32.mxu0 0.0
        %1457 = vmatmul.mubr.f32.gmra.mrb[0].mxu0 %v1357
        %v1458 = vpop.f32.mrb[0].mxu0
        %v1459 = vadd.f32 %v1335, %v1458
        %v1460 = vpop.f32.mrb[0].mxu0
        %1461 = vmatprep.mubr.f32.mxu0 0.0
        %1462 = vmatmul.mubr.f32.gmra.mrb[0].mxu0 %v1360
        %v1463 = vpop.f32.mrb[0].mxu0
        %v1464 = vadd.f32 %v1335, %v1463
        %v1465 = vpop.f32.mrb[0].mxu0
        %1466 = vdwg.mxu0
        %v1467 = vld [vmem:[%s520] sm:$0xff]
        %v1468 = vld [vmem:[%s520 + $0x8] sm:$0xff]
        %v1469 = vld [vmem:[%s520 + $0x10] sm:$0xff]
        %v1470 = vld [vmem:[%s520 + $0x18] sm:$0xff]
        %v1471 = vld [vmem:[%s520 + $0x20] sm:$0xff]
        %v1472 = vld [vmem:[%s520 + $0x28] sm:$0xff]
        %v1473 = vld [vmem:[%s520 + $0x30] sm:$0xff]
        %v1474 = vld [vmem:[%s520 + $0x38] sm:$0xff]
        %v1475 = vadd.f32 %v1467, %v1429
        %v1476 = vadd.f32 %v1468, %v1434
        %v1477 = vadd.f32 %v1469, %v1439
        %v1478 = vadd.f32 %v1470, %v1444
        %v1479 = vadd.f32 %v1471, %v1449
        %v1480 = vadd.f32 %v1472, %v1454
        %v1481 = vadd.f32 %v1473, %v1459
        %v1482 = vadd.f32 %v1474, %v1464
        %1483 = vxpose.xlu0.b32.start [1/16] %v1475, 128
        %1484 = vxpose.xlu0.b32.cont [2/16] %v1476, 128
        %1485 = vxpose.xlu0.b32.cont [3/16] 0.0, 128
        %1486 = vxpose.xlu0.b32.cont [4/16] 0.0, 128
        %1487 = vxpose.xlu0.b32.cont [5/16] 0.0, 128
        %1488 = vxpose.xlu0.b32.cont [6/16] 0.0, 128
        %1489 = vxpose.xlu0.b32.cont [7/16] 0.0, 128
        %1490 = vxpose.xlu0.b32.cont [8/16] 0.0, 128
        %1491 = vxpose.xlu0.b32.cont [9/16] 0.0, 128
        %1492 = vxpose.xlu0.b32.cont [10/16] 0.0, 128
        %1493 = vxpose.xlu0.b32.cont [11/16] 0.0, 128
        %1494 = vxpose.xlu0.b32.cont [12/16] 0.0, 128
        %1495 = vxpose.xlu0.b32.cont [13/16] 0.0, 128
        %1496 = vxpose.xlu0.b32.cont [14/16] 0.0, 128
        %1497 = vxpose.xlu0.b32.cont [15/16] 0.0, 128
        %1498 = vxpose.xlu0.b32.end [16/16] 0.0, 128
        %v1499 = vpop.trf.xlu0
        %v1500 = vpop.trf.xlu0
        %v1501 = vpop.trf.xlu0
        %v1502 = vpop.trf.xlu0
        %v1503 = vpop.trf.xlu0
        %v1504 = vpop.trf.xlu0
        %v1505 = vpop.trf.xlu0
        %v1506 = vpop.trf.xlu0
        %v1507 = vpop.trf.xlu0
        %v1508 = vpop.trf.xlu0
        %v1509 = vpop.trf.xlu0
        %v1510 = vpop.trf.xlu0
        %v1511 = vpop.trf.xlu0
        %v1512 = vpop.trf.xlu0
        %v1513 = vpop.trf.xlu0
        %v1514 = vpop.trf.xlu0
        %1515 = vxpose.xlu0.b32.start [1/16] %v1477, 128
        %1516 = vxpose.xlu0.b32.cont [2/16] %v1478, 128
        %1517 = vxpose.xlu0.b32.cont [3/16] 0.0, 128
        %1518 = vxpose.xlu0.b32.cont [4/16] 0.0, 128
        %1519 = vxpose.xlu0.b32.cont [5/16] 0.0, 128
        %1520 = vxpose.xlu0.b32.cont [6/16] 0.0, 128
        %1521 = vxpose.xlu0.b32.cont [7/16] 0.0, 128
        %1522 = vxpose.xlu0.b32.cont [8/16] 0.0, 128
        %1523 = vxpose.xlu0.b32.cont [9/16] 0.0, 128
        %1524 = vxpose.xlu0.b32.cont [10/16] 0.0, 128
        %1525 = vxpose.xlu0.b32.cont [11/16] 0.0, 128
        %1526 = vxpose.xlu0.b32.cont [12/16] 0.0, 128
        %1527 = vxpose.xlu0.b32.cont [13/16] 0.0, 128
        %1528 = vxpose.xlu0.b32.cont [14/16] 0.0, 128
        %1529 = vxpose.xlu0.b32.cont [15/16] 0.0, 128
        %1530 = vxpose.xlu0.b32.end [16/16] 0.0, 128
        %v1531 = vpop.trf.xlu0
        %v1532 = vpop.trf.xlu0
        %v1533 = vpop.trf.xlu0
        %v1534 = vpop.trf.xlu0
        %v1535 = vpop.trf.xlu0
        %v1536 = vpop.trf.xlu0
        %v1537 = vpop.trf.xlu0
        %v1538 = vpop.trf.xlu0
        %v1539 = vpop.trf.xlu0
        %v1540 = vpop.trf.xlu0
        %v1541 = vpop.trf.xlu0
        %v1542 = vpop.trf.xlu0
        %v1543 = vpop.trf.xlu0
        %v1544 = vpop.trf.xlu0
        %v1545 = vpop.trf.xlu0
        %v1546 = vpop.trf.xlu0
        %1547 = vxpose.xlu0.b32.start [1/16] %v1479, 128
        %1548 = vxpose.xlu0.b32.cont [2/16] %v1480, 128
        %1549 = vxpose.xlu0.b32.cont [3/16] 0.0, 128
        %1550 = vxpose.xlu0.b32.cont [4/16] 0.0, 128
        %1551 = vxpose.xlu0.b32.cont [5/16] 0.0, 128
        %1552 = vxpose.xlu0.b32.cont [6/16] 0.0, 128
        %1553 = vxpose.xlu0.b32.cont [7/16] 0.0, 128
        %1554 = vxpose.xlu0.b32.cont [8/16] 0.0, 128
        %1555 = vxpose.xlu0.b32.cont [9/16] 0.0, 128
        %1556 = vxpose.xlu0.b32.cont [10/16] 0.0, 128
        %1557 = vxpose.xlu0.b32.cont [11/16] 0.0, 128
        %1558 = vxpose.xlu0.b32.cont [12/16] 0.0, 128
        %1559 = vxpose.xlu0.b32.cont [13/16] 0.0, 128
        %1560 = vxpose.xlu0.b32.cont [14/16] 0.0, 128
        %1561 = vxpose.xlu0.b32.cont [15/16] 0.0, 128
        %1562 = vxpose.xlu0.b32.end [16/16] 0.0, 128
        %v1563 = vpop.trf.xlu0
        %v1564 = vpop.trf.xlu0
        %v1565 = vpop.trf.xlu0
        %v1566 = vpop.trf.xlu0
        %v1567 = vpop.trf.xlu0
        %v1568 = vpop.trf.xlu0
        %v1569 = vpop.trf.xlu0
        %v1570 = vpop.trf.xlu0
        %v1571 = vpop.trf.xlu0
        %v1572 = vpop.trf.xlu0
        %v1573 = vpop.trf.xlu0
        %v1574 = vpop.trf.xlu0
        %v1575 = vpop.trf.xlu0
        %v1576 = vpop.trf.xlu0
        %v1577 = vpop.trf.xlu0
        %v1578 = vpop.trf.xlu0
        %1579 = vxpose.xlu0.b32.start [1/16] %v1481, 128
        %1580 = vxpose.xlu0.b32.cont [2/16] %v1482, 128
        %1581 = vxpose.xlu0.b32.cont [3/16] 0.0, 128
        %1582 = vxpose.xlu0.b32.cont [4/16] 0.0, 128
        %1583 = vxpose.xlu0.b32.cont [5/16] 0.0, 128
        %1584 = vxpose.xlu0.b32.cont [6/16] 0.0, 128
        %1585 = vxpose.xlu0.b32.cont [7/16] 0.0, 128
        %1586 = vxpose.xlu0.b32.cont [8/16] 0.0, 128
        %1587 = vxpose.xlu0.b32.cont [9/16] 0.0, 128
        %1588 = vxpose.xlu0.b32.cont [10/16] 0.0, 128
        %1589 = vxpose.xlu0.b32.cont [11/16] 0.0, 128
        %1590 = vxpose.xlu0.b32.cont [12/16] 0.0, 128
        %1591 = vxpose.xlu0.b32.cont [13/16] 0.0, 128
        %1592 = vxpose.xlu0.b32.cont [14/16] 0.0, 128
        %1593 = vxpose.xlu0.b32.cont [15/16] 0.0, 128
        %1594 = vxpose.xlu0.b32.end [16/16] 0.0, 128
        %v1595 = vpop.trf.xlu0
        %v1596 = vpop.trf.xlu0
        %v1597 = vpop.trf.xlu0
        %v1598 = vpop.trf.xlu0
        %v1599 = vpop.trf.xlu0
        %v1600 = vpop.trf.xlu0
        %v1601 = vpop.trf.xlu0
        %v1602 = vpop.trf.xlu0
        %v1603 = vpop.trf.xlu0
        %v1604 = vpop.trf.xlu0
        %v1605 = vpop.trf.xlu0
        %v1606 = vpop.trf.xlu0
        %v1607 = vpop.trf.xlu0
        %v1608 = vpop.trf.xlu0
        %v1609 = vpop.trf.xlu0
        %v1610 = vpop.trf.xlu0
        %1611 = vst.msk [vmem:[%s535] sm:$0xff] %vm675, %v1499
        %1612 = vst.msk [vmem:[%s535 + $0x8] sm:$0xff] %vm675, %v1500
        %1613 = vst.msk [vmem:[%s535 + $0x10] sm:$0xff] %vm675, %v1501
        %1614 = vst.msk [vmem:[%s535 + $0x18] sm:$0xff] %vm675, %v1502
        %1615 = vst.msk [vmem:[%s535 + $0x20] sm:$0xff] %vm675, %v1531
        %1616 = vst.msk [vmem:[%s535 + $0x28] sm:$0xff] %vm675, %v1532
        %1617 = vst.msk [vmem:[%s535 + $0x30] sm:$0xff] %vm675, %v1533
        %1618 = vst.msk [vmem:[%s535 + $0x38] sm:$0xff] %vm675, %v1534
        %1619 = vst.msk [vmem:[%s535 + $0x40] sm:$0xff] %vm675, %v1563
        %1620 = vst.msk [vmem:[%s535 + $0x48] sm:$0xff] %vm675, %v1564
        %1621 = vst.msk [vmem:[%s535 + $0x50] sm:$0xff] %vm675, %v1565
        %1622 = vst.msk [vmem:[%s535 + $0x58] sm:$0xff] %vm675, %v1566
        %1623 = vst.msk [vmem:[%s535 + $0x60] sm:$0xff] %vm675, %v1595
        %1624 = vst.msk [vmem:[%s535 + $0x68] sm:$0xff] %vm675, %v1596
        %1625 = vst.msk [vmem:[%s535 + $0x70] sm:$0xff] %vm675, %v1597
        %1626 = vst.msk [vmem:[%s535 + $0x78] sm:$0xff] %vm675, %v1598
        %s1627 = smul.u32 4, %s34
        %p1628 = scmp.lt.s32.totalorder %s1627, 7
        %s1629 = scalar_select %p1628, %s1627, 7
        %s1630 = smul.addr %s1629, 4
        %s1631 = smul.addr %s1630, 8
        %s1632 = scalar_lea.vmem %s11, %s1631
        %s1633 = sand.u32 %s314, 1
        %s1634 = scalar_lea.sflag [#allocation4], %s1633
        %s1635 = sand.u32 %s314, 1
        %s1636 = smul.addr %s1635, 64
        %s1637 = scalar_lea.vmem [#allocation5], %s1636
        %s1638 = sand.u32 %s340, 1
        %s1639 = scalar_lea.sflag [#allocation7], %s1638
        %s1640 = sand.u32 %s340, 1
        %s1641 = smul.addr %s1640, 32
        %s1642 = scalar_lea.vmem [#allocation6], %s1641
        // Predicated region
        $region69: #{tpu_custom_call.1} parent=63 // pred_check
          %p1643 = pneg %p298
        $region70: #{tpu_custom_call.1} parent=63 // pred_check_branch
          %1645 = sbr.rel (%p1643) target = $region72
        $region71: #{tpu_custom_call.1} parent=63 // pred_region
          %s1646 = smul.u32 4, %s34
        $region72: #{tpu_custom_call.1} parent=63 // pred_fallthru
          _
        // Predicated region
        $region73: #{tpu_custom_call.1} parent=63 // pred_check
          %p1647 = pneg %p324
        $region74: #{tpu_custom_call.1} parent=63 // pred_check_branch
          %1649 = sbr.rel (%p1647) target = $region76
        $region75: #{tpu_custom_call.1} parent=63 // pred_region
          %s1650 = smul.u32 4, %s34
          %s1652 = ssub.s32 1024, 1024
          %1653 = vsyncadd %s1634, %s1652
          %s1654 = smul.addr %s1650, 2
          %s1655 = smul.addr %s1654, 128
          %s1656 = scalar_lea.hbm %s12, %s1655
          %s1657 = sshll.u32 %s1637, 4
          %s1658 = int_to_ptr.vmem [resolvable:$true] %s1657
          %1663 = dma.vmem_to_hbm [thread:$0]  %s1658, 1024, %s1656, %s1634, 128, 128, 8
        $region76: #{tpu_custom_call.1} parent=63 // pred_fallthru
          _
        // Predicated region
        $region77: #{tpu_custom_call.1} parent=63 // pred_check
          %p1664 = pneg %p350
        $region78: #{tpu_custom_call.1} parent=63 // pred_check_branch
          %1666 = sbr.rel (%p1664) target = $region80
        $region79: #{tpu_custom_call.1} parent=63 // pred_region
          %s1667 = smul.u32 4, %s34
          %s1669 = ssub.s32 512, 512
          %1670 = vsyncadd %s1639, %s1669
          %s1671 = smul.addr %s1667, 128
          %s1672 = scalar_lea.hbm %s13, %s1671
          %s1673 = sshll.u32 %s1642, 4
          %s1674 = int_to_ptr.vmem [resolvable:$true] %s1673
          %1679 = dma.vmem_to_hbm [thread:$0]  %s1674, 512, %s1672, %s1639, 128, 128, 8
        $region80: #{tpu_custom_call.1} parent=63 // pred_fallthru
          _
      $region64: #{tpu_custom_call.1} parent=5 // pred_fallthru
        _
      %p1680 = scmp.le.s32.totalorder 2, %s29
      // Predicated region
      $region81: #{tpu_custom_call.1} parent=5 // pred_check
        %p1681 = pneg %p1680
      $region82: #{tpu_custom_call.1} parent=5 // pred_check_branch
        %1683 = sbr.rel (%p1681) target = $region84
      $region83: #{tpu_custom_call.1} parent=5 // pred_region
        %s1684 = ssub.s32 %s29, 2
        // Predicated region
        $region85: #{tpu_custom_call.1} parent=83 // pred_check
          %p1685 = pneg %p304
        $region86: #{tpu_custom_call.1} parent=83 // pred_check_branch
          %1687 = sbr.rel (%p1685) target = $region88
        $region87: #{tpu_custom_call.1} parent=83 // pred_region
          %s1688 = smul.u32 4, %s35
          %p1689 = scmp.lt.s32.totalorder %s1688, 7
          %s1690 = scalar_select %p1689, %s1688, 7
          %s1691 = smul.addr %s1690, 4
          %s1692 = smul.addr %s1691, 8
          %s1693 = scalar_lea.vmem %s11, %s1692
        $region88: #{tpu_custom_call.1} parent=83 // pred_fallthru
          _
        // Predicated region
        $region89: #{tpu_custom_call.1} parent=83 // pred_check
          %p1694 = pneg %p330
        $region90: #{tpu_custom_call.1} parent=83 // pred_check_branch
          %1696 = sbr.rel (%p1694) target = $region92
        $region91: #{tpu_custom_call.1} parent=83 // pred_region
          %s1697 = sand.u32 %s315, 1
          %s1698 = scalar_lea.sflag [#allocation4], %s1697
          %s1699 = sand.u32 %s315, 1
          %s1700 = smul.addr %s1699, 64
          %s1701 = scalar_lea.vmem [#allocation5], %s1700
          %1702 = dma.done %s1698, 1024
        $region92: #{tpu_custom_call.1} parent=83 // pred_fallthru
          _
        // Predicated region
        $region93: #{tpu_custom_call.1} parent=83 // pred_check
          %p1703 = pneg %p356
        $region94: #{tpu_custom_call.1} parent=83 // pred_check_branch
          %1705 = sbr.rel (%p1703) target = $region96
        $region95: #{tpu_custom_call.1} parent=83 // pred_region
          %s1706 = sand.u32 %s341, 1
          %s1707 = scalar_lea.sflag [#allocation7], %s1706
          %s1708 = sand.u32 %s341, 1
          %s1709 = smul.addr %s1708, 32
          %s1710 = scalar_lea.vmem [#allocation6], %s1709
          %1711 = dma.done %s1707, 512
        $region96: #{tpu_custom_call.1} parent=83 // pred_fallthru
          _
      $region84: #{tpu_custom_call.1} parent=5 // pred_fallthru
        _
    $region6: #{tpu_custom_call.1} parent=1 // loop_footer
      %s33 = sadd.s32 1, %s29
    $region7: #{tpu_custom_call.1} parent=1 // loop_footer_branch
      %28 = sbr.rel target = $region3
    $region8: #{tpu_custom_call.1} parent=1 // loop_exit
      _
    %1712 = vsyncpa [#allocation3], 1
    %s1713 = scalar_lea.sflag [#allocation3], 1
    %1714 = vsyncpa %s1713, 1
    %1715 = vsyncpa [#allocation4], 1
    %s1716 = scalar_lea.sflag [#allocation4], 1
    %1717 = vsyncpa %s1716, 1
    %1718 = vsyncpa [#allocation7], 1
    %s1719 = scalar_lea.sflag [#allocation7], 1
    %1720 = vsyncpa %s1719, 1

</llo_original>
